<compile_context>
chip_gen: v6e
topology: v6e:2x2x1
jax: 0.10.0
libtpu: 0.0.40
codegen_flags: <defaults>
</compile_context>

<pallas_src>
import jax
import jax.numpy as jnp
import numpy as np
from jax.experimental import pallas as pl
from jax.experimental.pallas import tpu as pltpu

# Layer1 constants (d, k, b) and LBKTcell constants (r, factor_dim)
D_CONST = 10.0
K_CONST = 0.3
B_CONST = 0.3
R = 4
FACTOR_DIM = 50


def lbkt_kernel(
    # --- batch-tiled data ---
    interact_ref,    # [B, NU]
    corr_ref,        # [B, M]      correlation_weight
    topic_ref,       # [B, DTP]
    factor_ref,      # [B, 3]      (time, attempt, hint)
    hpre_ref,        # [B, M, NU]  h_pre (batch-major)
    # --- resident weights (pre-packed in the wrapper) ---
    wo_h_ref,        # [NU, NU]    output_layer weight, h-part (in,out)
    wo_t_ref,        # [DTP, NU]   output_layer weight, topic-part
    bo_ref,          # [1, NU]
    l1wh_ref,        # [NU, 3*NU]  Layer1 h-part weights, 3 heads packed on lanes
    l1wi_ref,        # [NU, 3*NU]  Layer1 interact-part weights
    l1b_ref,         # [1, 3*NU]   Layer1 biases packed
    gatex_ref,       # [3, 3*NU]   kron(eye(3), ones(1,NU)) gate lane-expander
    fusw_main_ref,   # [3, NU, R*NU]   fusion weights (gain rows), R packed on lanes
    fusw_pad_ref,    # [3, 1, R*NU]    fusion weights ("+1 pad" row)
    wfred_ref,       # [R*NU, NU]      kron(Wf.T, eye(NU)) reduction matrix
    fusb_ref,        # [1, NU]
    wg_h_ref,        # [NU, NU]    gate3 weight, h_pre chunk (in,out)
    wg_i_ref,        # [NU, NU]    gate3 weight, interact chunk
    wgfs_ref,        # [3, NU]     gate3 factor-chunk column sums
    bg_ref,          # [1, NU]
    # --- outputs ---
    preds_ref,       # [B, 1]
    h_ref,           # [B, M, NU]
):
    Bb, M, NU = hpre_ref.shape

    interact = interact_ref[...]
    topic = topic_ref[...]
    factors = factor_ref[...]
    corr = corr_ref[...]                                              # [B, M]
    h_pre = hpre_ref[...]                                             # [B, M, NU]
    corr3 = corr[:, :, None]                                          # [B, M, 1]

    # ---- h_pre_tilde = squeeze(bmm(corr_w.unsqueeze(1), h_pre), 1) ----------
    h_tilde = jnp.sum(corr3 * h_pre, axis=1)                          # [B, NU]

    # ---- preds = sum(sigmoid(output_layer(cat([h_tilde, topic])))) / NU -----
    out_lin = (jnp.dot(h_tilde, wo_h_ref[...], preferred_element_type=jnp.float32)
               + jnp.dot(topic, wo_t_ref[...], preferred_element_type=jnp.float32)
               + bo_ref[...])
    preds_ref[...] = jnp.sum(jax.nn.sigmoid(out_lin), axis=-1,
                             keepdims=True) * (1.0 / NU)

    # ---- Layer1 gains (time/attempt/hint), 3 heads packed on lanes ----------
    # gate = k + (1-k)/(1+exp(-d*(x-b))) == k + (1-k)*sigmoid(d*(x-b))  (EUP)
    gate = K_CONST + (1.0 - K_CONST) * jax.nn.sigmoid(
        D_CONST * (factors - B_CONST))                                # [B, 3]
    gate_packed = jnp.dot(gate, gatex_ref[...],
                          preferred_element_type=jnp.float32)         # [B, 3*NU]
    lin_all = (jnp.dot(h_tilde, l1wh_ref[...], preferred_element_type=jnp.float32)
               + jnp.dot(interact, l1wi_ref[...], preferred_element_type=jnp.float32)
               + l1b_ref[...])                                        # [B, 3*NU]
    gains_all = jax.nn.sigmoid(lin_all * gate_packed)                 # [B, 3*NU]

    # ---- rank-R multiplicative fusion, R blocks packed on lanes (R*NU=128) --
    prod = None
    for f in range(3):
        g_f = gains_all[:, f * NU:(f + 1) * NU]                       # [B, NU]
        term = (jnp.dot(g_f, fusw_main_ref[f],
                        preferred_element_type=jnp.float32)
                + fusw_pad_ref[f])                                    # [B, R*NU]
        prod = term if prod is None else prod * term
    fused = (jnp.dot(prod, wfred_ref[...], preferred_element_type=jnp.float32)
             + fusb_ref[...])                                         # [B, NU]
    lg = jnp.maximum(fused, 0.0)                                      # learning gain

    # ---- forget-gate, batch-level part (interact + repeated-factor chunks) --
    fg_b = (jnp.dot(interact, wg_i_ref[...], preferred_element_type=jnp.float32)
            + jnp.dot(factors, wgfs_ref[...], preferred_element_type=jnp.float32)
            + bg_ref[...])                                            # [B, NU]

    # ---- memory update: one (B*M, NU) matmul + single slab store ------------
    # TODO(synk): dropout(LG) omitted — eval-mode identity (inference only).
    fg_h = jnp.dot(h_pre.reshape(Bb * M, NU), wg_h_ref[...],
                   preferred_element_type=jnp.float32).reshape(Bb, M, NU)
    forget = jax.nn.sigmoid(fg_h + fg_b[:, None, :])                  # [B, M, NU]
    h_ref[...] = h_pre * forget + corr3 * lg[:, None, :]


def _resident(x):
    """Whole-array VMEM-resident BlockSpec (same block for every grid step)."""
    nd = x.ndim
    return pl.BlockSpec(tuple(x.shape), lambda *idx, _nd=nd: (0,) * _nd)


def lbkt_forward(params, interact_emb, correlation_weight, topic_emb,
                 time_factor, attempt_factor, hint_factor, h_pre, block_b=None):
    B, M, NU = h_pre.shape
    DTP = topic_emb.shape[-1]
    RNU = R * NU

    if block_b is None:
        block_b = B if B <= 128 else 128
    assert B % block_b == 0 and (block_b == B or block_b % 8 == 0)
    grid = (B // block_b,)

    # ----- batch-major data (no layout transposes in the wrapper) ------------
    factors = jnp.concatenate([time_factor, attempt_factor, hint_factor], axis=-1)

    # ----- weight packing (loop-invariant; done once in the wrapper) ---------
    f32 = jnp.float32
    l1wh = jnp.concatenate([params["l1_w"][f, :NU, :] for f in range(3)], axis=-1)
    l1wi = jnp.concatenate([params["l1_w"][f, NU:, :] for f in range(3)], axis=-1)
    l1b_packed = params["l1_b"].reshape(1, 3 * NU)
    gatex = jnp.kron(jnp.eye(3, dtype=f32), jnp.ones((1, NU), dtype=f32))  # [3, 3*NU]

    fw_packed = jnp.transpose(params["fus_w"], (0, 2, 1, 3)).reshape(3, NU + 1, RNU)
    fusw_main = fw_packed[:, :NU, :]                                   # [3, NU, R*NU]
    fusw_pad = fw_packed[:, NU:, :]                                    # [3, 1, R*NU]
    wf_reduce = jnp.kron(params["wf"].T, jnp.eye(NU, dtype=f32))       # [R*NU, NU]

    wgfs = jnp.sum(params["wg_f"], axis=1)                             # [3, NU]

    data_inputs = (interact_emb, correlation_weight, topic_emb, factors, h_pre)
    weight_inputs = (
        params["wo_h"], params["wo_t"], params["bo"],
        l1wh, l1wi, l1b_packed, gatex,
        fusw_main, fusw_pad, wf_reduce, params["fus_b"],
        params["wg_h"], params["wg_i"], wgfs, params["bg"],
    )

    in_specs = [
        pl.BlockSpec((block_b, NU), lambda i: (i, 0)),                 # interact
        pl.BlockSpec((block_b, M), lambda i: (i, 0)),                  # corr
        pl.BlockSpec((block_b, DTP), lambda i: (i, 0)),                # topic
        pl.BlockSpec((block_b, 3), lambda i: (i, 0)),                  # factors
        pl.BlockSpec((block_b, M, NU), lambda i: (i, 0, 0)),           # h_pre
    ] + [_resident(w) for w in weight_inputs]
    out_specs = (
        pl.BlockSpec((block_b, 1), lambda i: (i, 0)),                  # preds
        pl.BlockSpec((block_b, M, NU), lambda i: (i, 0, 0)),           # h
    )

    preds, h = pl.pallas_call(
        lbkt_kernel,
        grid=grid,
        out_shape=(jax.ShapeDtypeStruct((B, 1), jnp.float32),
                   jax.ShapeDtypeStruct((B, M, NU), jnp.float32)),
        in_specs=in_specs,
        out_specs=out_specs,
        compiler_params=pltpu.CompilerParams(
            dimension_semantics=("parallel",)),
    )(*data_inputs, *weight_inputs)
    return preds[:, 0], h


# ----------------------------- pure-JAX reference ----------------------------
def lbkt_reference(params, interact_emb, corr, topic, tf, af, hf, h_pre):
    B, M, NU = h_pre.shape
    h_tilde = jnp.einsum('bm,bmn->bn', corr, h_pre)
    out_lin = h_tilde @ params["wo_h"] + topic @ params["wo_t"] + params["bo"]
    preds = jnp.sum(jax.nn.sigmoid(out_lin), axis=-1) / NU

    fac = [tf, af, hf]
    gains = []
    for f in range(3):
        gate = K_CONST + (1 - K_CONST) / (1 + jnp.exp(-D_CONST * (fac[f] - B_CONST)))
        lin = (h_tilde @ params["l1_w"][f, :NU]
               + interact_emb @ params["l1_w"][f, NU:]
               + params["l1_b"][f:f + 1])
        gains.append(jax.nn.sigmoid(lin * gate))

    fusion_all = None
    for f in range(3):
        gain1 = jnp.concatenate([gains[f], jnp.ones_like(tf)], axis=-1)   # [B, NU+1]
        fus = jnp.einsum('bi,rin->rbn', gain1, params["fus_w"][f])
        fusion_all = fus if fusion_all is None else fusion_all * fus
    fused = jnp.einsum('r,rbn->bn', params["wf"][0], fusion_all) + params["fus_b"]
    lg = jnp.maximum(fused, 0.0)
    LG = corr[:, :, None] * lg[:, None, :]

    cat_in = jnp.concatenate(
        [h_pre,
         jnp.broadcast_to(interact_emb[:, None, :], (B, M, NU)),
         jnp.broadcast_to(tf[:, None, :], (B, M, FACTOR_DIM)),
         jnp.broadcast_to(af[:, None, :], (B, M, FACTOR_DIM)),
         jnp.broadcast_to(hf[:, None, :], (B, M, FACTOR_DIM))], axis=-1)
    wg_full = jnp.concatenate(
        [params["wg_h"], params["wg_i"],
         params["wg_f"][0], params["wg_f"][1], params["wg_f"][2]], axis=0)
    forget_gate = cat_in @ wg_full + params["bg"]
    h = h_pre * jax.nn.sigmoid(forget_gate) + LG
    return preds, h


def xavier_normal(key, shape):
    fan_in, fan_out = shape[-2], shape[-1]
    std = (2.0 / (fan_in + fan_out)) ** 0.5
    return (std * jax.random.normal(key, shape)).astype(jnp.float32)


if __name__ == "__main__":
    B, NU, M, DTP = 8, 32, 8, 16    # batch, num_units, memory_size, dim_tp

    key = jax.random.PRNGKey(0)
    ks = jax.random.split(key, 20)
    params = {
        "wo_h": xavier_normal(ks[0], (NU, NU)),
        "wo_t": xavier_normal(ks[1], (DTP, NU)),
        "bo": xavier_normal(ks[2], (1, NU)),
        "l1_w": xavier_normal(ks[3], (3, 2 * NU, NU)),
        "l1_b": xavier_normal(ks[4], (3, NU)),
        "fus_w": xavier_normal(ks[5], (3, R, NU + 1, NU)),
        "wf": xavier_normal(ks[6], (1, R)),
        "fus_b": xavier_normal(ks[7], (1, NU)),
        "wg_h": xavier_normal(ks[8], (NU, NU)),
        "wg_i": xavier_normal(ks[9], (NU, NU)),
        "wg_f": xavier_normal(ks[10], (3, FACTOR_DIM, NU)),
        "bg": (0.01 * jax.random.normal(ks[11], (1, NU))).astype(jnp.float32),
    }

    interact = jax.random.normal(ks[12], (B, NU), dtype=jnp.float32)
    corr = jax.nn.softmax(jax.random.normal(ks[13], (B, M), dtype=jnp.float32), axis=-1)
    topic = jax.random.normal(ks[14], (B, DTP), dtype=jnp.float32)
    tf = jax.random.uniform(ks[15], (B, 1), dtype=jnp.float32)
    af = jax.random.uniform(ks[16], (B, 1), dtype=jnp.float32)
    hf = jax.random.uniform(ks[17], (B, 1), dtype=jnp.float32)
    h_pre = jax.random.normal(ks[18], (B, M, NU), dtype=jnp.float32)

    preds, h = lbkt_forward(params, interact, corr, topic, tf, af, hf, h_pre)
    jax.block_until_ready((preds, h))

    preds_ref, h_ref = lbkt_reference(params, interact, corr, topic, tf, af, hf, h_pre)
    assert preds.shape == (B,) and h.shape == (B, M, NU)
    np.testing.assert_allclose(np.asarray(preds), np.asarray(preds_ref), rtol=1e-2, atol=1e-2)
    np.testing.assert_allclose(np.asarray(h), np.asarray(h_ref), rtol=1e-2, atol=1e-2)
    print("KERNEL_OK")
</pallas_src>

<mosaic_0001>
module attributes {stable_mosaic.version = 11 : i64} {
  func.func @lbkt_kernel(%arg0: i32, %arg1: memref<8x32xf32, #tpu.memory_space<vmem>>, %arg2: memref<8x8xf32, #tpu.memory_space<vmem>>, %arg3: memref<8x16xf32, #tpu.memory_space<vmem>>, %arg4: memref<8x3xf32, #tpu.memory_space<vmem>>, %arg5: memref<8x8x32xf32, #tpu.memory_space<vmem>>, %arg6: memref<32x32xf32, #tpu.memory_space<vmem>>, %arg7: memref<16x32xf32, #tpu.memory_space<vmem>>, %arg8: memref<1x32xf32, #tpu.memory_space<vmem>>, %arg9: memref<32x96xf32, #tpu.memory_space<vmem>>, %arg10: memref<32x96xf32, #tpu.memory_space<vmem>>, %arg11: memref<1x96xf32, #tpu.memory_space<vmem>>, %arg12: memref<3x96xf32, #tpu.memory_space<vmem>>, %arg13: memref<3x32x128xf32, #tpu.memory_space<vmem>>, %arg14: memref<3x1x128xf32, #tpu.memory_space<vmem>>, %arg15: memref<128x32xf32, #tpu.memory_space<vmem>>, %arg16: memref<1x32xf32, #tpu.memory_space<vmem>>, %arg17: memref<32x32xf32, #tpu.memory_space<vmem>>, %arg18: memref<32x32xf32, #tpu.memory_space<vmem>>, %arg19: memref<3x32xf32, #tpu.memory_space<vmem>>, %arg20: memref<1x32xf32, #tpu.memory_space<vmem>>, %arg21: memref<8x1xf32, #tpu.memory_space<vmem>>, %arg22: memref<8x8x32xf32, #tpu.memory_space<vmem>>) attributes {dimension_semantics = [#tpu.dimension_semantics<parallel>], iteration_bounds = array<i64: 1>, scalar_prefetch = 0 : i64, scratch_operands = 0 : i64, tpu.core_type = #tpu.core_type<tc>, window_params = [{transform_indices = @transform_0, window_bounds = array<i64: 8, 32>}, {transform_indices = @transform_1, window_bounds = array<i64: 8, 8>}, {transform_indices = @transform_2, window_bounds = array<i64: 8, 16>}, {transform_indices = @transform_3, window_bounds = array<i64: 8, 3>}, {transform_indices = @transform_4, window_bounds = array<i64: 8, 8, 32>}, {pipeline_mode = #tpu.pipeline_mode<synchronous>, transform_indices = @transform_5, window_bounds = array<i64: 32, 32>}, {pipeline_mode = #tpu.pipeline_mode<synchronous>, transform_indices = @transform_6, window_bounds = array<i64: 16, 32>}, {pipeline_mode = #tpu.pipeline_mode<synchronous>, transform_indices = @transform_7, window_bounds = array<i64: 1, 32>}, {pipeline_mode = #tpu.pipeline_mode<synchronous>, transform_indices = @transform_8, window_bounds = array<i64: 32, 96>}, {pipeline_mode = #tpu.pipeline_mode<synchronous>, transform_indices = @transform_9, window_bounds = array<i64: 32, 96>}, {pipeline_mode = #tpu.pipeline_mode<synchronous>, transform_indices = @transform_10, window_bounds = array<i64: 1, 96>}, {pipeline_mode = #tpu.pipeline_mode<synchronous>, transform_indices = @transform_11, window_bounds = array<i64: 3, 96>}, {pipeline_mode = #tpu.pipeline_mode<synchronous>, transform_indices = @transform_12, window_bounds = array<i64: 3, 32, 128>}, {pipeline_mode = #tpu.pipeline_mode<synchronous>, transform_indices = @transform_13, window_bounds = array<i64: 3, 1, 128>}, {pipeline_mode = #tpu.pipeline_mode<synchronous>, transform_indices = @transform_14, window_bounds = array<i64: 128, 32>}, {pipeline_mode = #tpu.pipeline_mode<synchronous>, transform_indices = @transform_15, window_bounds = array<i64: 1, 32>}, {pipeline_mode = #tpu.pipeline_mode<synchronous>, transform_indices = @transform_16, window_bounds = array<i64: 32, 32>}, {pipeline_mode = #tpu.pipeline_mode<synchronous>, transform_indices = @transform_17, window_bounds = array<i64: 32, 32>}, {pipeline_mode = #tpu.pipeline_mode<synchronous>, transform_indices = @transform_18, window_bounds = array<i64: 3, 32>}, {pipeline_mode = #tpu.pipeline_mode<synchronous>, transform_indices = @transform_19, window_bounds = array<i64: 1, 32>}, {transform_indices = @transform_20, window_bounds = array<i64: 8, 1>}, {transform_indices = @transform_21, window_bounds = array<i64: 8, 8, 32>}]} {
    %c0 = arith.constant 0 : index
    %c0_0 = arith.constant 0 : index
    %0 = vector.load %arg1[%c0, %c0_0] : memref<8x32xf32, #tpu.memory_space<vmem>>, vector<8x32xf32>
    %c0_1 = arith.constant 0 : index
    %c0_2 = arith.constant 0 : index
    %1 = vector.load %arg3[%c0_1, %c0_2] : memref<8x16xf32, #tpu.memory_space<vmem>>, vector<8x16xf32>
    %c0_3 = arith.constant 0 : index
    %c0_4 = arith.constant 0 : index
    %2 = vector.load %arg4[%c0_3, %c0_4] : memref<8x3xf32, #tpu.memory_space<vmem>>, vector<8x3xf32>
    %c0_5 = arith.constant 0 : index
    %c0_6 = arith.constant 0 : index
    %3 = vector.load %arg2[%c0_5, %c0_6] : memref<8x8xf32, #tpu.memory_space<vmem>>, vector<8x8xf32>
    %c0_7 = arith.constant 0 : index
    %c0_8 = arith.constant 0 : index
    %c0_9 = arith.constant 0 : index
    %4 = vector.load %arg5[%c0_7, %c0_8, %c0_9] : memref<8x8x32xf32, #tpu.memory_space<vmem>>, vector<8x8x32xf32>
    %5 = vector.shape_cast %3 : vector<8x8xf32> to vector<8x8x1xf32>
    %6 = vector.broadcast %5 : vector<8x8x1xf32> to vector<8x8x32xf32>
    %7 = arith.mulf %6, %4 : vector<8x8x32xf32>
    %cst = arith.constant dense<0.000000e+00> : vector<8x32xf32>
    %8 = vector.multi_reduction <add>, %7, %cst [1] : vector<8x8x32xf32> to vector<8x32xf32>
    %c0_10 = arith.constant 0 : index
    %c0_11 = arith.constant 0 : index
    %9 = vector.load %arg6[%c0_10, %c0_11] : memref<32x32xf32, #tpu.memory_space<vmem>>, vector<32x32xf32>
    %cst_12 = arith.constant dense<0.000000e+00> : vector<8x32xf32>
    %10 = tpu.matmul %8, %9, %cst_12 {dimension_numbers = #tpu.dot_dimension_numbers<[1], [0], [0], [1], [0, 0, 1, 1], [], []>} : vector<8x32xf32>, vector<32x32xf32>, vector<8x32xf32> -> vector<8x32xf32>
    %c0_13 = arith.constant 0 : index
    %c0_14 = arith.constant 0 : index
    %11 = vector.load %arg7[%c0_13, %c0_14] : memref<16x32xf32, #tpu.memory_space<vmem>>, vector<16x32xf32>
    %cst_15 = arith.constant dense<0.000000e+00> : vector<8x32xf32>
    %12 = tpu.matmul %1, %11, %cst_15 {dimension_numbers = #tpu.dot_dimension_numbers<[1], [0], [0], [1], [0, 0, 1, 1], [], []>} : vector<8x16xf32>, vector<16x32xf32>, vector<8x32xf32> -> vector<8x32xf32>
    %13 = arith.addf %10, %12 : vector<8x32xf32>
    %c0_16 = arith.constant 0 : index
    %c0_17 = arith.constant 0 : index
    %14 = vector.load %arg8[%c0_16, %c0_17] : memref<1x32xf32, #tpu.memory_space<vmem>>, vector<1x32xf32>
    %15 = vector.broadcast %14 : vector<1x32xf32> to vector<8x32xf32>
    %16 = arith.addf %13, %15 : vector<8x32xf32>
    %17 = arith.negf %16 : vector<8x32xf32>
    %18 = math.exp %17 : vector<8x32xf32>
    %cst_18 = arith.constant 1.000000e+00 : f32
    %19 = vector.broadcast %cst_18 : f32 to vector<8x32xf32>
    %20 = arith.addf %19, %18 : vector<8x32xf32>
    %21 = arith.divf %19, %20 : vector<8x32xf32>
    %cst_19 = arith.constant dense<0.000000e+00> : vector<8xf32>
    %22 = vector.multi_reduction <add>, %21, %cst_19 [1] : vector<8x32xf32> to vector<8xf32>
    %23 = vector.shape_cast %22 : vector<8xf32> to vector<8x1xf32>
    %cst_20 = arith.constant 3.125000e-02 : f32
    %24 = vector.broadcast %cst_20 : f32 to vector<8x1xf32>
    %25 = arith.mulf %23, %24 : vector<8x1xf32>
    %c0_21 = arith.constant 0 : index
    %c0_22 = arith.constant 0 : index
    %26 = vector.load %arg21[%c0_21, %c0_22] : memref<8x1xf32, #tpu.memory_space<vmem>>, vector<8x1xf32>
    tpu.vector_store %arg21[%c0_21, %c0_22], %25 {strides = array<i32>} : memref<8x1xf32, #tpu.memory_space<vmem>>, vector<8x1xf32>,
    %cst_23 = arith.constant 3.000000e-01 : f32
    %27 = vector.broadcast %cst_23 : f32 to vector<8x3xf32>
    %28 = arith.subf %2, %27 : vector<8x3xf32>
    %cst_24 = arith.constant 1.000000e+01 : f32
    %29 = vector.broadcast %cst_24 : f32 to vector<8x3xf32>
    %30 = arith.mulf %29, %28 : vector<8x3xf32>
    %31 = arith.negf %30 : vector<8x3xf32>
    %32 = math.exp %31 : vector<8x3xf32>
    %cst_25 = arith.constant 1.000000e+00 : f32
    %33 = vector.broadcast %cst_25 : f32 to vector<8x3xf32>
    %34 = arith.addf %33, %32 : vector<8x3xf32>
    %35 = arith.divf %33, %34 : vector<8x3xf32>
    %cst_26 = arith.constant 0.699999988 : f32
    %36 = vector.broadcast %cst_26 : f32 to vector<8x3xf32>
    %37 = arith.mulf %36, %35 : vector<8x3xf32>
    %cst_27 = arith.constant 3.000000e-01 : f32
    %38 = vector.broadcast %cst_27 : f32 to vector<8x3xf32>
    %39 = arith.addf %38, %37 : vector<8x3xf32>
    %c0_28 = arith.constant 0 : index
    %c0_29 = arith.constant 0 : index
    %40 = vector.load %arg12[%c0_28, %c0_29] : memref<3x96xf32, #tpu.memory_space<vmem>>, vector<3x96xf32>
    %cst_30 = arith.constant dense<0.000000e+00> : vector<8x96xf32>
    %41 = tpu.matmul %39, %40, %cst_30 {dimension_numbers = #tpu.dot_dimension_numbers<[1], [0], [0], [1], [0, 0, 1, 1], [], []>} : vector<8x3xf32>, vector<3x96xf32>, vector<8x96xf32> -> vector<8x96xf32>
    %c0_31 = arith.constant 0 : index
    %c0_32 = arith.constant 0 : index
    %42 = vector.load %arg9[%c0_31, %c0_32] : memref<32x96xf32, #tpu.memory_space<vmem>>, vector<32x96xf32>
    %cst_33 = arith.constant dense<0.000000e+00> : vector<8x96xf32>
    %43 = tpu.matmul %8, %42, %cst_33 {dimension_numbers = #tpu.dot_dimension_numbers<[1], [0], [0], [1], [0, 0, 1, 1], [], []>} : vector<8x32xf32>, vector<32x96xf32>, vector<8x96xf32> -> vector<8x96xf32>
    %c0_34 = arith.constant 0 : index
    %c0_35 = arith.constant 0 : index
    %44 = vector.load %arg10[%c0_34, %c0_35] : memref<32x96xf32, #tpu.memory_space<vmem>>, vector<32x96xf32>
    %cst_36 = arith.constant dense<0.000000e+00> : vector<8x96xf32>
    %45 = tpu.matmul %0, %44, %cst_36 {dimension_numbers = #tpu.dot_dimension_numbers<[1], [0], [0], [1], [0, 0, 1, 1], [], []>} : vector<8x32xf32>, vector<32x96xf32>, vector<8x96xf32> -> vector<8x96xf32>
    %46 = arith.addf %43, %45 : vector<8x96xf32>
    %c0_37 = arith.constant 0 : index
    %c0_38 = arith.constant 0 : index
    %47 = vector.load %arg11[%c0_37, %c0_38] : memref<1x96xf32, #tpu.memory_space<vmem>>, vector<1x96xf32>
    %48 = vector.broadcast %47 : vector<1x96xf32> to vector<8x96xf32>
    %49 = arith.addf %46, %48 : vector<8x96xf32>
    %50 = arith.mulf %49, %41 : vector<8x96xf32>
    %51 = arith.negf %50 : vector<8x96xf32>
    %52 = math.exp %51 : vector<8x96xf32>
    %cst_39 = arith.constant 1.000000e+00 : f32
    %53 = vector.broadcast %cst_39 : f32 to vector<8x96xf32>
    %54 = arith.addf %53, %52 : vector<8x96xf32>
    %55 = arith.divf %53, %54 : vector<8x96xf32>
    %56 = vector.extract_strided_slice %55 {offsets = [0, 0], sizes = [8, 32], strides = [1, 1]} : vector<8x96xf32> to vector<8x32xf32>
    %c0_40 = arith.constant 0 : index
    %c0_41 = arith.constant 0 : index
    %c0_42 = arith.constant 0 : index
    %57 = vector.load %arg13[%c0_40, %c0_41, %c0_42] : memref<3x32x128xf32, #tpu.memory_space<vmem>>, vector<1x32x128xf32>
    %58 = vector.shape_cast %57 : vector<1x32x128xf32> to vector<32x128xf32>
    %cst_43 = arith.constant dense<0.000000e+00> : vector<8x128xf32>
    %59 = tpu.matmul %56, %58, %cst_43 {dimension_numbers = #tpu.dot_dimension_numbers<[1], [0], [0], [1], [0, 0, 1, 1], [], []>} : vector<8x32xf32>, vector<32x128xf32>, vector<8x128xf32> -> vector<8x128xf32>
    %c0_44 = arith.constant 0 : index
    %c0_45 = arith.constant 0 : index
    %c0_46 = arith.constant 0 : index
    %60 = vector.load %arg14[%c0_44, %c0_45, %c0_46] : memref<3x1x128xf32, #tpu.memory_space<vmem>>, vector<1x1x128xf32>
    %61 = vector.shape_cast %60 : vector<1x1x128xf32> to vector<1x128xf32>
    %62 = vector.broadcast %61 : vector<1x128xf32> to vector<8x128xf32>
    %63 = arith.addf %59, %62 : vector<8x128xf32>
    %64 = vector.extract_strided_slice %55 {offsets = [0, 32], sizes = [8, 32], strides = [1, 1]} : vector<8x96xf32> to vector<8x32xf32>
    %c1 = arith.constant 1 : index
    %c0_47 = arith.constant 0 : index
    %c0_48 = arith.constant 0 : index
    %65 = vector.load %arg13[%c1, %c0_47, %c0_48] : memref<3x32x128xf32, #tpu.memory_space<vmem>>, vector<1x32x128xf32>
    %66 = vector.shape_cast %65 : vector<1x32x128xf32> to vector<32x128xf32>
    %cst_49 = arith.constant dense<0.000000e+00> : vector<8x128xf32>
    %67 = tpu.matmul %64, %66, %cst_49 {dimension_numbers = #tpu.dot_dimension_numbers<[1], [0], [0], [1], [0, 0, 1, 1], [], []>} : vector<8x32xf32>, vector<32x128xf32>, vector<8x128xf32> -> vector<8x128xf32>
    %c1_50 = arith.constant 1 : index
    %c0_51 = arith.constant 0 : index
    %c0_52 = arith.constant 0 : index
    %68 = vector.load %arg14[%c1_50, %c0_51, %c0_52] : memref<3x1x128xf32, #tpu.memory_space<vmem>>, vector<1x1x128xf32>
    %69 = vector.shape_cast %68 : vector<1x1x128xf32> to vector<1x128xf32>
    %70 = vector.broadcast %69 : vector<1x128xf32> to vector<8x128xf32>
    %71 = arith.addf %67, %70 : vector<8x128xf32>
    %72 = arith.mulf %63, %71 : vector<8x128xf32>
    %73 = vector.extract_strided_slice %55 {offsets = [0, 64], sizes = [8, 32], strides = [1, 1]} : vector<8x96xf32> to vector<8x32xf32>
    %c2 = arith.constant 2 : index
    %c0_53 = arith.constant 0 : index
    %c0_54 = arith.constant 0 : index
    %74 = vector.load %arg13[%c2, %c0_53, %c0_54] : memref<3x32x128xf32, #tpu.memory_space<vmem>>, vector<1x32x128xf32>
    %75 = vector.shape_cast %74 : vector<1x32x128xf32> to vector<32x128xf32>
    %cst_55 = arith.constant dense<0.000000e+00> : vector<8x128xf32>
    %76 = tpu.matmul %73, %75, %cst_55 {dimension_numbers = #tpu.dot_dimension_numbers<[1], [0], [0], [1], [0, 0, 1, 1], [], []>} : vector<8x32xf32>, vector<32x128xf32>, vector<8x128xf32> -> vector<8x128xf32>
    %c2_56 = arith.constant 2 : index
    %c0_57 = arith.constant 0 : index
    %c0_58 = arith.constant 0 : index
    %77 = vector.load %arg14[%c2_56, %c0_57, %c0_58] : memref<3x1x128xf32, #tpu.memory_space<vmem>>, vector<1x1x128xf32>
    %78 = vector.shape_cast %77 : vector<1x1x128xf32> to vector<1x128xf32>
    %79 = vector.broadcast %78 : vector<1x128xf32> to vector<8x128xf32>
    %80 = arith.addf %76, %79 : vector<8x128xf32>
    %81 = arith.mulf %72, %80 : vector<8x128xf32>
    %c0_59 = arith.constant 0 : index
    %c0_60 = arith.constant 0 : index
    %82 = vector.load %arg15[%c0_59, %c0_60] : memref<128x32xf32, #tpu.memory_space<vmem>>, vector<128x32xf32>
    %cst_61 = arith.constant dense<0.000000e+00> : vector<8x32xf32>
    %83 = tpu.matmul %81, %82, %cst_61 {dimension_numbers = #tpu.dot_dimension_numbers<[1], [0], [0], [1], [0, 0, 1, 1], [], []>} : vector<8x128xf32>, vector<128x32xf32>, vector<8x32xf32> -> vector<8x32xf32>
    %c0_62 = arith.constant 0 : index
    %c0_63 = arith.constant 0 : index
    %84 = vector.load %arg16[%c0_62, %c0_63] : memref<1x32xf32, #tpu.memory_space<vmem>>, vector<1x32xf32>
    %85 = vector.broadcast %84 : vector<1x32xf32> to vector<8x32xf32>
    %86 = arith.addf %83, %85 : vector<8x32xf32>
    %cst_64 = arith.constant 0.000000e+00 : f32
    %87 = vector.broadcast %cst_64 : f32 to vector<8x32xf32>
    %88 = arith.maximumf %86, %87 : vector<8x32xf32>
    %c0_65 = arith.constant 0 : index
    %c0_66 = arith.constant 0 : index
    %89 = vector.load %arg18[%c0_65, %c0_66] : memref<32x32xf32, #tpu.memory_space<vmem>>, vector<32x32xf32>
    %cst_67 = arith.constant dense<0.000000e+00> : vector<8x32xf32>
    %90 = tpu.matmul %0, %89, %cst_67 {dimension_numbers = #tpu.dot_dimension_numbers<[1], [0], [0], [1], [0, 0, 1, 1], [], []>} : vector<8x32xf32>, vector<32x32xf32>, vector<8x32xf32> -> vector<8x32xf32>
    %c0_68 = arith.constant 0 : index
    %c0_69 = arith.constant 0 : index
    %91 = vector.load %arg19[%c0_68, %c0_69] : memref<3x32xf32, #tpu.memory_space<vmem>>, vector<3x32xf32>
    %cst_70 = arith.constant dense<0.000000e+00> : vector<8x32xf32>
    %92 = tpu.matmul %2, %91, %cst_70 {dimension_numbers = #tpu.dot_dimension_numbers<[1], [0], [0], [1], [0, 0, 1, 1], [], []>} : vector<8x3xf32>, vector<3x32xf32>, vector<8x32xf32> -> vector<8x32xf32>
    %93 = arith.addf %90, %92 : vector<8x32xf32>
    %c0_71 = arith.constant 0 : index
    %c0_72 = arith.constant 0 : index
    %94 = vector.load %arg20[%c0_71, %c0_72] : memref<1x32xf32, #tpu.memory_space<vmem>>, vector<1x32xf32>
    %95 = vector.broadcast %94 : vector<1x32xf32> to vector<8x32xf32>
    %96 = arith.addf %93, %95 : vector<8x32xf32>
    %97 = vector.shape_cast %4 : vector<8x8x32xf32> to vector<64x32xf32>
    %c0_73 = arith.constant 0 : index
    %c0_74 = arith.constant 0 : index
    %98 = vector.load %arg17[%c0_73, %c0_74] : memref<32x32xf32, #tpu.memory_space<vmem>>, vector<32x32xf32>
    %cst_75 = arith.constant dense<0.000000e+00> : vector<64x32xf32>
    %99 = tpu.matmul %97, %98, %cst_75 {dimension_numbers = #tpu.dot_dimension_numbers<[1], [0], [0], [1], [0, 0, 1, 1], [], []>} : vector<64x32xf32>, vector<32x32xf32>, vector<64x32xf32> -> vector<64x32xf32>
    %100 = vector.shape_cast %99 : vector<64x32xf32> to vector<8x8x32xf32>
    %101 = vector.shape_cast %96 : vector<8x32xf32> to vector<8x1x32xf32>
    %102 = vector.broadcast %101 : vector<8x1x32xf32> to vector<8x8x32xf32>
    %103 = arith.addf %100, %102 : vector<8x8x32xf32>
    %104 = arith.negf %103 : vector<8x8x32xf32>
    %105 = math.exp %104 : vector<8x8x32xf32>
    %cst_76 = arith.constant 1.000000e+00 : f32
    %106 = vector.broadcast %cst_76 : f32 to vector<8x8x32xf32>
    %107 = arith.addf %106, %105 : vector<8x8x32xf32>
    %108 = arith.divf %106, %107 : vector<8x8x32xf32>
    %109 = arith.mulf %4, %108 : vector<8x8x32xf32>
    %110 = vector.shape_cast %88 : vector<8x32xf32> to vector<8x1x32xf32>
    %111 = vector.broadcast %5 : vector<8x8x1xf32> to vector<8x8x32xf32>
    %112 = vector.broadcast %110 : vector<8x1x32xf32> to vector<8x8x32xf32>
    %113 = arith.mulf %111, %112 : vector<8x8x32xf32>
    %114 = arith.addf %109, %113 : vector<8x8x32xf32>
    %c0_77 = arith.constant 0 : index
    %c0_78 = arith.constant 0 : index
    %c0_79 = arith.constant 0 : index
    %115 = vector.load %arg22[%c0_77, %c0_78, %c0_79] : memref<8x8x32xf32, #tpu.memory_space<vmem>>, vector<8x8x32xf32>
    tpu.vector_store %arg22[%c0_77, %c0_78, %c0_79], %114 {strides = array<i32>} : memref<8x8x32xf32, #tpu.memory_space<vmem>>, vector<8x8x32xf32>,
    return
  }
  func.func @transform_0(%arg0: i32) -> (i32, i32) {
    %c0_i32 = arith.constant 0 : i32
    %c0_i32_0 = arith.constant 0 : i32
    return %arg0, %c0_i32 : i32, i32
  }
  func.func @transform_1(%arg0: i32) -> (i32, i32) {
    %c0_i32 = arith.constant 0 : i32
    %c0_i32_0 = arith.constant 0 : i32
    return %arg0, %c0_i32 : i32, i32
  }
  func.func @transform_2(%arg0: i32) -> (i32, i32) {
    %c0_i32 = arith.constant 0 : i32
    %c0_i32_0 = arith.constant 0 : i32
    return %arg0, %c0_i32 : i32, i32
  }
  func.func @transform_3(%arg0: i32) -> (i32, i32) {
    %c0_i32 = arith.constant 0 : i32
    %c0_i32_0 = arith.constant 0 : i32
    return %arg0, %c0_i32 : i32, i32
  }
  func.func @transform_4(%arg0: i32) -> (i32, i32, i32) {
    %c0_i32 = arith.constant 0 : i32
    %c0_i32_0 = arith.constant 0 : i32
    %c0_i32_1 = arith.constant 0 : i32
    return %arg0, %c0_i32, %c0_i32_0 : i32, i32, i32
  }
  func.func @transform_5(%arg0: i32) -> (i32, i32) {
    %c0_i32 = arith.constant 0 : i32
    %c0_i32_0 = arith.constant 0 : i32
    %c0_i32_1 = arith.constant 0 : i32
    return %c0_i32, %c0_i32_0 : i32, i32
  }
  func.func @transform_6(%arg0: i32) -> (i32, i32) {
    %c0_i32 = arith.constant 0 : i32
    %c0_i32_0 = arith.constant 0 : i32
    %c0_i32_1 = arith.constant 0 : i32
    return %c0_i32, %c0_i32_0 : i32, i32
  }
  func.func @transform_7(%arg0: i32) -> (i32, i32) {
    %c0_i32 = arith.constant 0 : i32
    %c0_i32_0 = arith.constant 0 : i32
    %c0_i32_1 = arith.constant 0 : i32
    return %c0_i32, %c0_i32_0 : i32, i32
  }
  func.func @transform_8(%arg0: i32) -> (i32, i32) {
    %c0_i32 = arith.constant 0 : i32
    %c0_i32_0 = arith.constant 0 : i32
    %c0_i32_1 = arith.constant 0 : i32
    return %c0_i32, %c0_i32_0 : i32, i32
  }
  func.func @transform_9(%arg0: i32) -> (i32, i32) {
    %c0_i32 = arith.constant 0 : i32
    %c0_i32_0 = arith.constant 0 : i32
    %c0_i32_1 = arith.constant 0 : i32
    return %c0_i32, %c0_i32_0 : i32, i32
  }
  func.func @transform_10(%arg0: i32) -> (i32, i32) {
    %c0_i32 = arith.constant 0 : i32
    %c0_i32_0 = arith.constant 0 : i32
    %c0_i32_1 = arith.constant 0 : i32
    return %c0_i32, %c0_i32_0 : i32, i32
  }
  func.func @transform_11(%arg0: i32) -> (i32, i32) {
    %c0_i32 = arith.constant 0 : i32
    %c0_i32_0 = arith.constant 0 : i32
    %c0_i32_1 = arith.constant 0 : i32
    return %c0_i32, %c0_i32_0 : i32, i32
  }
  func.func @transform_12(%arg0: i32) -> (i32, i32, i32) {
    %c0_i32 = arith.constant 0 : i32
    %c0_i32_0 = arith.constant 0 : i32
    %c0_i32_1 = arith.constant 0 : i32
    %c0_i32_2 = arith.constant 0 : i32
    return %c0_i32, %c0_i32_0, %c0_i32_1 : i32, i32, i32
  }
  func.func @transform_13(%arg0: i32) -> (i32, i32, i32) {
    %c0_i32 = arith.constant 0 : i32
    %c0_i32_0 = arith.constant 0 : i32
    %c0_i32_1 = arith.constant 0 : i32
    %c0_i32_2 = arith.constant 0 : i32
    return %c0_i32, %c0_i32_0, %c0_i32_1 : i32, i32, i32
  }
  func.func @transform_14(%arg0: i32) -> (i32, i32) {
    %c0_i32 = arith.constant 0 : i32
    %c0_i32_0 = arith.constant 0 : i32
    %c0_i32_1 = arith.constant 0 : i32
    return %c0_i32, %c0_i32_0 : i32, i32
  }
  func.func @transform_15(%arg0: i32) -> (i32, i32) {
    %c0_i32 = arith.constant 0 : i32
    %c0_i32_0 = arith.constant 0 : i32
    %c0_i32_1 = arith.constant 0 : i32
    return %c0_i32, %c0_i32_0 : i32, i32
  }
  func.func @transform_16(%arg0: i32) -> (i32, i32) {
    %c0_i32 = arith.constant 0 : i32
    %c0_i32_0 = arith.constant 0 : i32
    %c0_i32_1 = arith.constant 0 : i32
    return %c0_i32, %c0_i32_0 : i32, i32
  }
  func.func @transform_17(%arg0: i32) -> (i32, i32) {
    %c0_i32 = arith.constant 0 : i32
    %c0_i32_0 = arith.constant 0 : i32
    %c0_i32_1 = arith.constant 0 : i32
    return %c0_i32, %c0_i32_0 : i32, i32
  }
  func.func @transform_18(%arg0: i32) -> (i32, i32) {
    %c0_i32 = arith.constant 0 : i32
    %c0_i32_0 = arith.constant 0 : i32
    %c0_i32_1 = arith.constant 0 : i32
    return %c0_i32, %c0_i32_0 : i32, i32
  }
  func.func @transform_19(%arg0: i32) -> (i32, i32) {
    %c0_i32 = arith.constant 0 : i32
    %c0_i32_0 = arith.constant 0 : i32
    %c0_i32_1 = arith.constant 0 : i32
    return %c0_i32, %c0_i32_0 : i32, i32
  }
  func.func @transform_20(%arg0: i32) -> (i32, i32) {
    %c0_i32 = arith.constant 0 : i32
    %c0_i32_0 = arith.constant 0 : i32
    return %arg0, %c0_i32 : i32, i32
  }
  func.func @transform_21(%arg0: i32) -> (i32, i32, i32) {
    %c0_i32 = arith.constant 0 : i32
    %c0_i32_0 = arith.constant 0 : i32
    %c0_i32_1 = arith.constant 0 : i32
    return %arg0, %c0_i32, %c0_i32_0 : i32, i32, i32
  }
}

</mosaic_0001>

<llo_original>
// kernel: tpu_custom_call.1
$region0: #{tpu_custom_call.1}
  #allocation0 [shape = 'u32[]', space=smem, size = 0x4, offset = 0x4, fixed_abs, tag = 'smem constant byte address 0x4 - core index']
  #allocation1 [shape = 'u32[144,128]{1,0:T(1,128)}', space=vmem, size = 0x12000, scoped, tag = 'internal scratch']
  %s0 = inlined_call_operand.hbm [shape: f32[8,32], index: 0, kind: input, shape index: {}]
  %s1 = inlined_call_operand.hbm [shape: f32[8,8], index: 1, kind: input, shape index: {}]
  %s2 = inlined_call_operand.hbm [shape: f32[8,16], index: 2, kind: input, shape index: {}]
  %s3 = inlined_call_operand.vmem [shape: f32[8,3], index: 3, kind: input, shape index: {}]
  %s4 = inlined_call_operand.vmem [shape: f32[8,8,32], index: 4, kind: input, shape index: {}]
  %s5 = inlined_call_operand.hbm [shape: f32[32,32], index: 5, kind: input, shape index: {}]
  %s6 = inlined_call_operand.hbm [shape: f32[16,32], index: 6, kind: input, shape index: {}]
  %s7 = inlined_call_operand.vmem [shape: f32[1,32], index: 7, kind: input, shape index: {}]
  %s8 = inlined_call_operand.hbm [shape: f32[32,96], index: 8, kind: input, shape index: {}]
  %s9 = inlined_call_operand.hbm [shape: f32[32,96], index: 9, kind: input, shape index: {}]
  %s10 = inlined_call_operand.hbm [shape: f32[1,96], index: 10, kind: input, shape index: {}]
  %s11 = inlined_call_operand.vmem [shape: f32[3,96], index: 11, kind: input, shape index: {}]
  %s12 = inlined_call_operand.vmem [shape: f32[3,32,128], index: 12, kind: input, shape index: {}]
  %s13 = inlined_call_operand.hbm [shape: f32[3,1,128], index: 13, kind: input, shape index: {}]
  %s14 = inlined_call_operand.vmem [shape: f32[128,32], index: 14, kind: input, shape index: {}]
  %s15 = inlined_call_operand.hbm [shape: f32[1,32], index: 15, kind: input, shape index: {}]
  %s16 = inlined_call_operand.hbm [shape: f32[32,32], index: 16, kind: input, shape index: {}]
  %s17 = inlined_call_operand.hbm [shape: f32[32,32], index: 17, kind: input, shape index: {}]
  %s18 = inlined_call_operand.vmem [shape: f32[3,32], index: 18, kind: input, shape index: {}]
  %s19 = inlined_call_operand.vmem [shape: f32[1,32], index: 19, kind: input, shape index: {}]
  %s20 = inlined_call_operand.vmem [shape: f32[8,1], index: 20, kind: output, shape index: {0}]
  %s21 = inlined_call_operand.hbm [shape: f32[8,8,32], index: 21, kind: output, shape index: {1}]
  %22 = xla_tuple %s20, %s21
  %s23 = sld [smem:[#allocation0]]
  $region146: #{tpu_custom_call.1} parent=0
    _
  %s25 = ssub.s32 1, %s23
  %s26 = scalar_select 0, %s25, %s23
  $region1: #{tpu_custom_call.1} parent=0
    #allocation2 [shape = 'u8[4096]{0}', space=vmem, size = 0x1000, scoped, tag = 'input window, operand 0, single buffered']
    #allocation3 [shape = 's32[1]{0}', space=sflag, size = 0x4, scoped, tag = 'scoped memory for tpu_custom_call.1']
    #allocation4 [shape = 's32[1]{0}', space=sflag, size = 0x4, scoped, tag = 'scoped memory for tpu_custom_call.1']
    #allocation5 [shape = 'u8[4096]{0}', space=vmem, size = 0x1000, scoped, tag = 'input window, operand 1, single buffered']
    #allocation6 [shape = 's32[1]{0}', space=sflag, size = 0x4, scoped, tag = 'scoped memory for tpu_custom_call.1']
    #allocation7 [shape = 'u8[4096]{0}', space=vmem, size = 0x1000, scoped, tag = 'input window, operand 2, single buffered']
    #allocation8 [shape = 'u8[16384]{0}', space=vmem, size = 0x4000, scoped, tag = 'input window, operand 5, single buffered']
    #allocation9 [shape = 's32[1]{0}', space=sflag, size = 0x4, scoped, tag = 'scoped memory for tpu_custom_call.1']
    #allocation10 [shape = 'u8[8192]{0}', space=vmem, size = 0x2000, scoped, tag = 'input window, operand 6, single buffered']
    #allocation11 [shape = 'u8[16384]{0}', space=vmem, size = 0x4000, scoped, tag = 'input window, operand 8, single buffered']
    #allocation12 [shape = 's32[1]{0}', space=sflag, size = 0x4, scoped, tag = 'scoped memory for tpu_custom_call.1']
    #allocation13 [shape = 'u8[16384]{0}', space=vmem, size = 0x4000, scoped, tag = 'input window, operand 9, single buffered']
    #allocation14 [shape = 'u8[512]{0}', space=vmem, size = 0x400, scoped, tag = 'input window, operand 10, single buffered']
    #allocation15 [shape = 's32[1]{0}', space=sflag, size = 0x4, scoped, tag = 'scoped memory for tpu_custom_call.1']
    #allocation16 [shape = 'u8[1536]{0}', space=vmem, size = 0x800, scoped, tag = 'input window, operand 13, single buffered']
    #allocation17 [shape = 'u8[512]{0}', space=vmem, size = 0x400, scoped, tag = 'input window, operand 15, single buffered']
    #allocation18 [shape = 's32[1]{0}', space=sflag, size = 0x4, scoped, tag = 'scoped memory for tpu_custom_call.1']
    #allocation19 [shape = 'u8[16384]{0}', space=vmem, size = 0x4000, scoped, tag = 'input window, operand 16, single buffered']
    #allocation20 [shape = 'u8[16384]{0}', space=vmem, size = 0x4000, scoped, tag = 'input window, operand 17, single buffered']
    #allocation21 [shape = 's32[1]{0}', space=sflag, size = 0x4, scoped, tag = 'scoped memory for tpu_custom_call.1']
    #allocation22 [shape = 'u8[32768]{0}', space=vmem, size = 0x8000, scoped, tag = 'output window, operand 1, single buffered']
    %27 = vsyncpa [#allocation3], 0
    %28 = vsyncpa [#allocation6], 0
    %29 = vsyncpa [#allocation9], 0
    %30 = vsyncpa [#allocation12], 0
    %31 = vsyncpa [#allocation15], 0
    %32 = vsyncpa [#allocation18], 0
    %33 = vsyncpa [#allocation21], 0
    %34 = vsyncpa [#allocation4], 0
    // Predicated region
    $region2: #{tpu_custom_call.1} parent=1 // pred_check
      _
    $region3: #{tpu_custom_call.1} parent=1 // pred_check_branch
      %36 = sbr.rel (0) target = $region5
    $region4: #{tpu_custom_call.1} parent=1 // pred_region
      %s38 = ssub.s32 128, 128
      %39 = vsyncadd [#allocation3], %s38
      %s41 = sshll.u32 [#allocation2], 4
      %s42 = int_to_ptr.vmem [resolvable:$true] %s41
      %44 = dma.hbm_to_vmem [thread:$0]  %s0, 128, %s42, [#allocation3]
    $region5: #{tpu_custom_call.1} parent=1 // pred_fallthru
      _
    // Predicated region
    $region6: #{tpu_custom_call.1} parent=1 // pred_check
      _
    $region7: #{tpu_custom_call.1} parent=1 // pred_check_branch
      %46 = sbr.rel (0) target = $region9
    $region8: #{tpu_custom_call.1} parent=1 // pred_region
      %s48 = ssub.s32 128, 128
      %49 = vsyncadd [#allocation6], %s48
      %s51 = sshll.u32 [#allocation5], 4
      %s52 = int_to_ptr.vmem [resolvable:$true] %s51
      %54 = dma.hbm_to_vmem [thread:$0]  %s1, 128, %s52, [#allocation6]
    $region9: #{tpu_custom_call.1} parent=1 // pred_fallthru
      _
    // Predicated region
    $region10: #{tpu_custom_call.1} parent=1 // pred_check
      _
    $region11: #{tpu_custom_call.1} parent=1 // pred_check_branch
      %56 = sbr.rel (0) target = $region13
    $region12: #{tpu_custom_call.1} parent=1 // pred_region
      %s58 = ssub.s32 128, 128
      %59 = vsyncadd [#allocation6], %s58
      %s61 = sshll.u32 [#allocation7], 4
      %s62 = int_to_ptr.vmem [resolvable:$true] %s61
      %64 = dma.hbm_to_vmem [thread:$0]  %s2, 128, %s62, [#allocation6]
    $region13: #{tpu_custom_call.1} parent=1 // pred_fallthru
      _
    // Predicated region
    $region14: #{tpu_custom_call.1} parent=1 // pred_check
      _
    $region15: #{tpu_custom_call.1} parent=1 // pred_check_branch
      %66 = sbr.rel (0) target = $region17
    $region16: #{tpu_custom_call.1} parent=1 // pred_region
      _
    $region17: #{tpu_custom_call.1} parent=1 // pred_fallthru
      _
    // Predicated region
    $region18: #{tpu_custom_call.1} parent=1 // pred_check
      _
    $region19: #{tpu_custom_call.1} parent=1 // pred_check_branch
      %68 = sbr.rel (0) target = $region21
    $region20: #{tpu_custom_call.1} parent=1 // pred_region
      _
    $region21: #{tpu_custom_call.1} parent=1 // pred_fallthru
      _
    // Predicated region
    $region22: #{tpu_custom_call.1} parent=1 // pred_check
      _
    $region23: #{tpu_custom_call.1} parent=1 // pred_check_branch
      %70 = sbr.rel (0) target = $region25
    $region24: #{tpu_custom_call.1} parent=1 // pred_region
      %s72 = ssub.s32 512, 512
      %73 = vsyncadd [#allocation9], %s72
      %s74 = sshll.u32 [#allocation8], 4
      %s75 = int_to_ptr.vmem [resolvable:$true] %s74
      %80 = dma.hbm_to_vmem [thread:$0]  %s5, 512, %s75, [#allocation9], 128, 128, 8
    $region25: #{tpu_custom_call.1} parent=1 // pred_fallthru
      _
    // Predicated region
    $region26: #{tpu_custom_call.1} parent=1 // pred_check
      _
    $region27: #{tpu_custom_call.1} parent=1 // pred_check_branch
      %82 = sbr.rel (0) target = $region29
    $region28: #{tpu_custom_call.1} parent=1 // pred_region
      %s84 = ssub.s32 256, 256
      %85 = vsyncadd [#allocation9], %s84
      %s86 = sshll.u32 [#allocation10], 4
      %s87 = int_to_ptr.vmem [resolvable:$true] %s86
      %92 = dma.hbm_to_vmem [thread:$0]  %s6, 256, %s87, [#allocation9], 128, 128, 8
    $region29: #{tpu_custom_call.1} parent=1 // pred_fallthru
      _
    // Predicated region
    $region30: #{tpu_custom_call.1} parent=1 // pred_check
      _
    $region31: #{tpu_custom_call.1} parent=1 // pred_check_branch
      %94 = sbr.rel (0) target = $region33
    $region32: #{tpu_custom_call.1} parent=1 // pred_region
      _
    $region33: #{tpu_custom_call.1} parent=1 // pred_fallthru
      _
    // Predicated region
    $region34: #{tpu_custom_call.1} parent=1 // pred_check
      _
    $region35: #{tpu_custom_call.1} parent=1 // pred_check_branch
      %96 = sbr.rel (0) target = $region37
    $region36: #{tpu_custom_call.1} parent=1 // pred_region
      %s98 = ssub.s32 512, 512
      %99 = vsyncadd [#allocation12], %s98
      %s100 = sshll.u32 [#allocation11], 4
      %s101 = int_to_ptr.vmem [resolvable:$true] %s100
      %106 = dma.hbm_to_vmem [thread:$0]  %s8, 512, %s101, [#allocation12], 128, 128, 8
    $region37: #{tpu_custom_call.1} parent=1 // pred_fallthru
      _
    // Predicated region
    $region38: #{tpu_custom_call.1} parent=1 // pred_check
      _
    $region39: #{tpu_custom_call.1} parent=1 // pred_check_branch
      %108 = sbr.rel (0) target = $region41
    $region40: #{tpu_custom_call.1} parent=1 // pred_region
      %s110 = ssub.s32 512, 512
      %111 = vsyncadd [#allocation12], %s110
      %s112 = sshll.u32 [#allocation13], 4
      %s113 = int_to_ptr.vmem [resolvable:$true] %s112
      %118 = dma.hbm_to_vmem [thread:$0]  %s9, 512, %s113, [#allocation12], 128, 128, 8
    $region41: #{tpu_custom_call.1} parent=1 // pred_fallthru
      _
    // Predicated region
    $region42: #{tpu_custom_call.1} parent=1 // pred_check
      _
    $region43: #{tpu_custom_call.1} parent=1 // pred_check_branch
      %120 = sbr.rel (0) target = $region45
    $region44: #{tpu_custom_call.1} parent=1 // pred_region
      %s122 = ssub.s32 16, 16
      %123 = vsyncadd [#allocation15], %s122
      %s125 = sshll.u32 [#allocation14], 4
      %s126 = int_to_ptr.vmem [resolvable:$true] %s125
      %128 = dma.hbm_to_vmem [thread:$0]  %s10, 16, %s126, [#allocation15]
    $region45: #{tpu_custom_call.1} parent=1 // pred_fallthru
      _
    // Predicated region
    $region46: #{tpu_custom_call.1} parent=1 // pred_check
      _
    $region47: #{tpu_custom_call.1} parent=1 // pred_check_branch
      %130 = sbr.rel (0) target = $region49
    $region48: #{tpu_custom_call.1} parent=1 // pred_region
      _
    $region49: #{tpu_custom_call.1} parent=1 // pred_fallthru
      _
    // Predicated region
    $region50: #{tpu_custom_call.1} parent=1 // pred_check
      _
    $region51: #{tpu_custom_call.1} parent=1 // pred_check_branch
      %132 = sbr.rel (0) target = $region53
    $region52: #{tpu_custom_call.1} parent=1 // pred_region
      _
    $region53: #{tpu_custom_call.1} parent=1 // pred_fallthru
      _
    // Predicated region
    $region54: #{tpu_custom_call.1} parent=1 // pred_check
      _
    $region55: #{tpu_custom_call.1} parent=1 // pred_check_branch
      %134 = sbr.rel (0) target = $region57
    $region56: #{tpu_custom_call.1} parent=1 // pred_region
      %s136 = ssub.s32 48, 48
      %137 = vsyncadd [#allocation15], %s136
      %s138 = sshll.u32 [#allocation16], 4
      %s139 = int_to_ptr.vmem [resolvable:$true] %s138
      %144 = dma.hbm_to_vmem [thread:$0]  %s13, 48, %s139, [#allocation15], 16, 16, 1
    $region57: #{tpu_custom_call.1} parent=1 // pred_fallthru
      _
    // Predicated region
    $region58: #{tpu_custom_call.1} parent=1 // pred_check
      _
    $region59: #{tpu_custom_call.1} parent=1 // pred_check_branch
      %146 = sbr.rel (0) target = $region61
    $region60: #{tpu_custom_call.1} parent=1 // pred_region
      _
    $region61: #{tpu_custom_call.1} parent=1 // pred_fallthru
      _
    // Predicated region
    $region62: #{tpu_custom_call.1} parent=1 // pred_check
      _
    $region63: #{tpu_custom_call.1} parent=1 // pred_check_branch
      %148 = sbr.rel (0) target = $region65
    $region64: #{tpu_custom_call.1} parent=1 // pred_region
      %s150 = ssub.s32 16, 16
      %151 = vsyncadd [#allocation18], %s150
      %s153 = sshll.u32 [#allocation17], 4
      %s154 = int_to_ptr.vmem [resolvable:$true] %s153
      %156 = dma.hbm_to_vmem [thread:$0]  %s15, 16, %s154, [#allocation18]
    $region65: #{tpu_custom_call.1} parent=1 // pred_fallthru
      _
    // Predicated region
    $region66: #{tpu_custom_call.1} parent=1 // pred_check
      _
    $region67: #{tpu_custom_call.1} parent=1 // pred_check_branch
      %158 = sbr.rel (0) target = $region69
    $region68: #{tpu_custom_call.1} parent=1 // pred_region
      %s160 = ssub.s32 512, 512
      %161 = vsyncadd [#allocation18], %s160
      %s162 = sshll.u32 [#allocation19], 4
      %s163 = int_to_ptr.vmem [resolvable:$true] %s162
      %168 = dma.hbm_to_vmem [thread:$0]  %s16, 512, %s163, [#allocation18], 128, 128, 8
    $region69: #{tpu_custom_call.1} parent=1 // pred_fallthru
      _
    // Predicated region
    $region70: #{tpu_custom_call.1} parent=1 // pred_check
      _
    $region71: #{tpu_custom_call.1} parent=1 // pred_check_branch
      %170 = sbr.rel (0) target = $region73
    $region72: #{tpu_custom_call.1} parent=1 // pred_region
      %s172 = ssub.s32 512, 512
      %173 = vsyncadd [#allocation21], %s172
      %s174 = sshll.u32 [#allocation20], 4
      %s175 = int_to_ptr.vmem [resolvable:$true] %s174
      %180 = dma.hbm_to_vmem [thread:$0]  %s17, 512, %s175, [#allocation21], 128, 128, 8
    $region73: #{tpu_custom_call.1} parent=1 // pred_fallthru
      _
    // Predicated region
    $region74: #{tpu_custom_call.1} parent=1 // pred_check
      _
    $region75: #{tpu_custom_call.1} parent=1 // pred_check_branch
      %182 = sbr.rel (0) target = $region77
    $region76: #{tpu_custom_call.1} parent=1 // pred_region
      _
    $region77: #{tpu_custom_call.1} parent=1 // pred_fallthru
      _
    // Predicated region
    $region78: #{tpu_custom_call.1} parent=1 // pred_check
      _
    $region79: #{tpu_custom_call.1} parent=1 // pred_check_branch
      %184 = sbr.rel (0) target = $region81
    $region80: #{tpu_custom_call.1} parent=1 // pred_region
      _
    $region81: #{tpu_custom_call.1} parent=1 // pred_fallthru
      _
    // Predicated region
    $region82: #{tpu_custom_call.1} parent=1 // pred_check
      _
    $region83: #{tpu_custom_call.1} parent=1 // pred_check_branch
      %186 = sbr.rel (0) target = $region85
    $region84: #{tpu_custom_call.1} parent=1 // pred_region
      %187 = dma.done [#allocation3], 128
    $region85: #{tpu_custom_call.1} parent=1 // pred_fallthru
      _
    // Predicated region
    $region86: #{tpu_custom_call.1} parent=1 // pred_check
      _
    $region87: #{tpu_custom_call.1} parent=1 // pred_check_branch
      %189 = sbr.rel (0) target = $region89
    $region88: #{tpu_custom_call.1} parent=1 // pred_region
      %190 = dma.done [#allocation6], 128
    $region89: #{tpu_custom_call.1} parent=1 // pred_fallthru
      _
    // Predicated region
    $region90: #{tpu_custom_call.1} parent=1 // pred_check
      _
    $region91: #{tpu_custom_call.1} parent=1 // pred_check_branch
      %192 = sbr.rel (0) target = $region93
    $region92: #{tpu_custom_call.1} parent=1 // pred_region
      %193 = dma.done [#allocation6], 128
    $region93: #{tpu_custom_call.1} parent=1 // pred_fallthru
      _
    // Predicated region
    $region94: #{tpu_custom_call.1} parent=1 // pred_check
      _
    $region95: #{tpu_custom_call.1} parent=1 // pred_check_branch
      %195 = sbr.rel (0) target = $region97
    $region96: #{tpu_custom_call.1} parent=1 // pred_region
      %196 = dma.done [#allocation9], 512
    $region97: #{tpu_custom_call.1} parent=1 // pred_fallthru
      _
    // Predicated region
    $region98: #{tpu_custom_call.1} parent=1 // pred_check
      _
    $region99: #{tpu_custom_call.1} parent=1 // pred_check_branch
      %198 = sbr.rel (0) target = $region101
    $region100: #{tpu_custom_call.1} parent=1 // pred_region
      %199 = dma.done [#allocation9], 256
    $region101: #{tpu_custom_call.1} parent=1 // pred_fallthru
      _
    // Predicated region
    $region102: #{tpu_custom_call.1} parent=1 // pred_check
      _
    $region103: #{tpu_custom_call.1} parent=1 // pred_check_branch
      %201 = sbr.rel (0) target = $region105
    $region104: #{tpu_custom_call.1} parent=1 // pred_region
      %202 = dma.done [#allocation12], 512
    $region105: #{tpu_custom_call.1} parent=1 // pred_fallthru
      _
    // Predicated region
    $region106: #{tpu_custom_call.1} parent=1 // pred_check
      _
    $region107: #{tpu_custom_call.1} parent=1 // pred_check_branch
      %204 = sbr.rel (0) target = $region109
    $region108: #{tpu_custom_call.1} parent=1 // pred_region
      %205 = dma.done [#allocation12], 512
    $region109: #{tpu_custom_call.1} parent=1 // pred_fallthru
      _
    // Predicated region
    $region110: #{tpu_custom_call.1} parent=1 // pred_check
      _
    $region111: #{tpu_custom_call.1} parent=1 // pred_check_branch
      %207 = sbr.rel (0) target = $region113
    $region112: #{tpu_custom_call.1} parent=1 // pred_region
      %208 = dma.done [#allocation15], 16
    $region113: #{tpu_custom_call.1} parent=1 // pred_fallthru
      _
    // Predicated region
    $region114: #{tpu_custom_call.1} parent=1 // pred_check
      _
    $region115: #{tpu_custom_call.1} parent=1 // pred_check_branch
      %210 = sbr.rel (0) target = $region117
    $region116: #{tpu_custom_call.1} parent=1 // pred_region
      %211 = dma.done [#allocation15], 48
    $region117: #{tpu_custom_call.1} parent=1 // pred_fallthru
      _
    // Predicated region
    $region118: #{tpu_custom_call.1} parent=1 // pred_check
      _
    $region119: #{tpu_custom_call.1} parent=1 // pred_check_branch
      %213 = sbr.rel (0) target = $region121
    $region120: #{tpu_custom_call.1} parent=1 // pred_region
      %214 = dma.done [#allocation18], 16
    $region121: #{tpu_custom_call.1} parent=1 // pred_fallthru
      _
    // Predicated region
    $region122: #{tpu_custom_call.1} parent=1 // pred_check
      _
    $region123: #{tpu_custom_call.1} parent=1 // pred_check_branch
      %216 = sbr.rel (0) target = $region125
    $region124: #{tpu_custom_call.1} parent=1 // pred_region
      %217 = dma.done [#allocation18], 512
    $region125: #{tpu_custom_call.1} parent=1 // pred_fallthru
      _
    // Predicated region
    $region126: #{tpu_custom_call.1} parent=1 // pred_check
      _
    $region127: #{tpu_custom_call.1} parent=1 // pred_check_branch
      %219 = sbr.rel (0) target = $region129
    $region128: #{tpu_custom_call.1} parent=1 // pred_region
      %220 = dma.done [#allocation21], 512
    $region129: #{tpu_custom_call.1} parent=1 // pred_fallthru
      _
    %v221 = vld [vmem:[#allocation2] sm:$0xff]
    %v222 = vld [vmem:[#allocation7] sm:$0xff]
    %v223 = vld [vmem:[%s3] sm:$0xff]
    %v224 = vld [vmem:[#allocation5] sm:$0xff]
    %v225 = vld [vmem:[%s4] sm:$0xff]
    %v226 = vld [vmem:[%s4 + $0x8] sm:$0xff]
    %v227 = vld [vmem:[%s4 + $0x10] sm:$0xff]
    %v228 = vld [vmem:[%s4 + $0x18] sm:$0xff]
    %v229 = vld [vmem:[%s4 + $0x20] sm:$0xff]
    %v230 = vld [vmem:[%s4 + $0x28] sm:$0xff]
    %v231 = vld [vmem:[%s4 + $0x30] sm:$0xff]
    %v232 = vld [vmem:[%s4 + $0x38] sm:$0xff]
    %v233 = vlaneseq
    %v234 = vshrl.u32 %v233, 7
    %v235 = vsub.s32 0, %v234
    %v236 = vrot.slane %v224, %v235
    %238 = vbcast.lane.b32.xlu0 %v236, 256
    %v239 = vpop.permute.xlu0 %238
    %v240 = vlaneseq
    %v241 = vshrl.u32 %v240, 7
    %v242 = vsub.s32 1, %v241
    %v243 = vrot.slane %v224, %v242
    %245 = vbcast.lane.b32.xlu0 %v243, 256
    %v246 = vpop.permute.xlu0 %245
    %v247 = vlaneseq
    %v248 = vshrl.u32 %v247, 7
    %v249 = vsub.s32 2, %v248
    %v250 = vrot.slane %v224, %v249
    %252 = vbcast.lane.b32.xlu0 %v250, 256
    %v253 = vpop.permute.xlu0 %252
    %v254 = vlaneseq
    %v255 = vshrl.u32 %v254, 7
    %v256 = vsub.s32 3, %v255
    %v257 = vrot.slane %v224, %v256
    %259 = vbcast.lane.b32.xlu0 %v257, 256
    %v260 = vpop.permute.xlu0 %259
    %v261 = vlaneseq
    %v262 = vshrl.u32 %v261, 7
    %v263 = vsub.s32 4, %v262
    %v264 = vrot.slane %v224, %v263
    %266 = vbcast.lane.b32.xlu0 %v264, 256
    %v267 = vpop.permute.xlu0 %266
    %v268 = vlaneseq
    %v269 = vshrl.u32 %v268, 7
    %v270 = vsub.s32 5, %v269
    %v271 = vrot.slane %v224, %v270
    %273 = vbcast.lane.b32.xlu0 %v271, 256
    %v274 = vpop.permute.xlu0 %273
    %v275 = vlaneseq
    %v276 = vshrl.u32 %v275, 7
    %v277 = vsub.s32 6, %v276
    %v278 = vrot.slane %v224, %v277
    %280 = vbcast.lane.b32.xlu0 %v278, 256
    %v281 = vpop.permute.xlu0 %280
    %v282 = vlaneseq
    %v283 = vshrl.u32 %v282, 7
    %v284 = vsub.s32 7, %v283
    %v285 = vrot.slane %v224, %v284
    %287 = vbcast.lane.b32.xlu0 %v285, 256
    %v288 = vpop.permute.xlu0 %287
    %v289 = vmul.f32 %v239, %v225
    %v290 = vmul.f32 %v246, %v226
    %v291 = vmul.f32 %v253, %v227
    %v292 = vmul.f32 %v260, %v228
    %v293 = vmul.f32 %v267, %v229
    %v294 = vmul.f32 %v274, %v230
    %v295 = vmul.f32 %v281, %v231
    %v296 = vmul.f32 %v288, %v232
    %vm297 = vcmask 261120
    %v298 = vsel %vm297, %v289, 0.0
    %v299 = vrot.slane %v298, 4
    %v300 = vadd.f32 %v298, %v299
    %v301 = vrot.slane %v300, 2
    %v302 = vadd.f32 %v300, %v301
    %v303 = vrot.slane %v302, 1
    %v304 = vadd.f32 %v302, %v303
    %v305 = vsel %vm297, %v290, 0.0
    %v306 = vrot.slane %v305, 4
    %v307 = vadd.f32 %v305, %v306
    %v308 = vrot.slane %v307, 2
    %v309 = vadd.f32 %v307, %v308
    %v310 = vrot.slane %v309, 1
    %v311 = vadd.f32 %v309, %v310
    %v312 = vsel %vm297, %v291, 0.0
    %v313 = vrot.slane %v312, 4
    %v314 = vadd.f32 %v312, %v313
    %v315 = vrot.slane %v314, 2
    %v316 = vadd.f32 %v314, %v315
    %v317 = vrot.slane %v316, 1
    %v318 = vadd.f32 %v316, %v317
    %v319 = vsel %vm297, %v292, 0.0
    %v320 = vrot.slane %v319, 4
    %v321 = vadd.f32 %v319, %v320
    %v322 = vrot.slane %v321, 2
    %v323 = vadd.f32 %v321, %v322
    %v324 = vrot.slane %v323, 1
    %v325 = vadd.f32 %v323, %v324
    %v326 = vsel %vm297, %v293, 0.0
    %v327 = vrot.slane %v326, 4
    %v328 = vadd.f32 %v326, %v327
    %v329 = vrot.slane %v328, 2
    %v330 = vadd.f32 %v328, %v329
    %v331 = vrot.slane %v330, 1
    %v332 = vadd.f32 %v330, %v331
    %v333 = vsel %vm297, %v294, 0.0
    %v334 = vrot.slane %v333, 4
    %v335 = vadd.f32 %v333, %v334
    %v336 = vrot.slane %v335, 2
    %v337 = vadd.f32 %v335, %v336
    %v338 = vrot.slane %v337, 1
    %v339 = vadd.f32 %v337, %v338
    %v340 = vsel %vm297, %v295, 0.0
    %v341 = vrot.slane %v340, 4
    %v342 = vadd.f32 %v340, %v341
    %v343 = vrot.slane %v342, 2
    %v344 = vadd.f32 %v342, %v343
    %v345 = vrot.slane %v344, 1
    %v346 = vadd.f32 %v344, %v345
    %v347 = vsel %vm297, %v296, 0.0
    %v348 = vrot.slane %v347, 4
    %v349 = vadd.f32 %v347, %v348
    %v350 = vrot.slane %v349, 2
    %v351 = vadd.f32 %v349, %v350
    %v352 = vrot.slane %v351, 1
    %v353 = vadd.f32 %v351, %v352
    %v354 = vld [vmem:[#allocation8] sm:$0xff]
    %v355 = vld [vmem:[#allocation8 + $0x8] sm:$0xff]
    %v356 = vld [vmem:[#allocation8 + $0x10] sm:$0xff]
    %v357 = vld [vmem:[#allocation8 + $0x18] sm:$0xff]
    %v358 = vld [vmem:[#allocation10] sm:$0xff]
    %v359 = vld [vmem:[#allocation10 + $0x8] sm:$0xff]
    %vm360 = vcmask 130048
    %v362 = vsel %vm360, %v222, 0
    %364 = vmatprep.subr.mxu0 0.0
    %365 = vmatpush1.msra.mxu0 0.0
    %366 = vmatprep.subr.mxu0 0.0
    %367 = vmatpush1.msra.mxu0 0.0
    %368 = vmatprep.subr.mxu0 0.0
    %369 = vmatpush1.msra.mxu0 0.0
    %370 = vmatprep.subr.mxu0 0.0
    %371 = vmatpush1.msra.mxu0 0.0
    %372 = vmatprep.subr.mxu0 0.0
    %373 = vmatpush1.msra.mxu0 0.0
    %374 = vmatprep.subr.mxu0 0.0
    %375 = vmatpush1.msra.mxu0 0.0
    %376 = vmatprep.subr.mxu0 0.0
    %377 = vmatpush1.msra.mxu0 0.0
    %378 = vmatprep.subr.mxu0 0.0
    %379 = vmatpush1.msra.mxu0 0.0
    %380 = vmatprep.subr.mxu0 0.0
    %381 = vmatpush1.msra.mxu0 0.0
    %382 = vmatprep.subr.mxu0 0.0
    %383 = vmatpush1.msra.mxu0 0.0
    %384 = vmatprep.subr.mxu0 0.0
    %385 = vmatpush1.msra.mxu0 0.0
    %386 = vmatprep.subr.mxu0 0.0
    %387 = vmatpush1.msra.mxu0 0.0
    %388 = vmatprep.subr.mxu0 0.0
    %389 = vmatpush1.msra.mxu0 0.0
    %390 = vmatprep.subr.mxu0 0.0
    %391 = vmatpush1.msra.mxu0 0.0
    %392 = vmatprep.subr.mxu0 0.0
    %393 = vmatpush1.msra.mxu0 %v359
    %394 = vmatprep.subr.mxu0 0.0
    %395 = vmatpush1.msra.mxu0 %v358
    %396 = vmatprep.subr.mxu0 0.0
    %397 = vmatpush2.msra.mxu0 0.0
    %398 = vmatprep.subr.mxu0 0.0
    %399 = vmatpush2.msra.mxu0 0.0
    %400 = vmatprep.subr.mxu0 0.0
    %401 = vmatpush2.msra.mxu0 0.0
    %402 = vmatprep.subr.mxu0 0.0
    %403 = vmatpush2.msra.mxu0 0.0
    %404 = vmatprep.subr.mxu0 0.0
    %405 = vmatpush2.msra.mxu0 0.0
    %406 = vmatprep.subr.mxu0 0.0
    %407 = vmatpush2.msra.mxu0 0.0
    %408 = vmatprep.subr.mxu0 0.0
    %409 = vmatpush2.msra.mxu0 0.0
    %410 = vmatprep.subr.mxu0 0.0
    %411 = vmatpush2.msra.mxu0 0.0
    %412 = vmatprep.subr.mxu0 0.0
    %413 = vmatpush2.msra.mxu0 0.0
    %414 = vmatprep.subr.mxu0 0.0
    %415 = vmatpush2.msra.mxu0 0.0
    %416 = vmatprep.subr.mxu0 0.0
    %417 = vmatpush2.msra.mxu0 0.0
    %418 = vmatprep.subr.mxu0 0.0
    %419 = vmatpush2.msra.mxu0 0.0
    %420 = vmatprep.subr.mxu0 0.0
    %421 = vmatpush2.msra.mxu0 0.0
    %422 = vmatprep.subr.mxu0 0.0
    %423 = vmatpush2.msra.mxu0 0.0
    %424 = vmatprep.subr.mxu0 0.0
    %425 = vmatpush2.msra.mxu0 0.0
    %426 = vmatprep.subr.mxu0 0.0
    %427 = vmatpush2.msra.mxu0 0.0
    %428 = vmatprep.mubr.f32.mxu0 0.0
    %429 = vmatmul.mubr.f32.gmra.mxu0 %v362
    %v430 = vpop.f32.mrf.mxu0
    %v431 = vadd.f32 0.0, %v430
    %v432 = vpop.f32.mrf.mxu0
    %433 = vdwg.mxu0
    %vm442 = vcmask 1041409
    %v443 = vsel %vm442, %v311, %v304
    %vm444 = vcmask 1042434
    %v445 = vsel %vm444, %v318, %v443
    %vm446 = vcmask 1043459
    %v447 = vsel %vm446, %v325, %v445
    %vm448 = vcmask 1044484
    %v449 = vsel %vm448, %v332, %v447
    %vm450 = vcmask 1045509
    %v451 = vsel %vm450, %v339, %v449
    %vm452 = vcmask 1046534
    %v453 = vsel %vm452, %v346, %v451
    %vm454 = vcmask 1047559
    %v455 = vsel %vm454, %v353, %v453
    %v456 = vsel %vm297, %v455, 0
    %458 = vmatprep.subr.mxu0 0.0
    %459 = vmatpush1.msra.mxu0 0.0
    %460 = vmatprep.subr.mxu0 0.0
    %461 = vmatpush1.msra.mxu0 0.0
    %462 = vmatprep.subr.mxu0 0.0
    %463 = vmatpush1.msra.mxu0 0.0
    %464 = vmatprep.subr.mxu0 0.0
    %465 = vmatpush1.msra.mxu0 0.0
    %466 = vmatprep.subr.mxu0 0.0
    %467 = vmatpush1.msra.mxu0 0.0
    %468 = vmatprep.subr.mxu0 0.0
    %469 = vmatpush1.msra.mxu0 0.0
    %470 = vmatprep.subr.mxu0 0.0
    %471 = vmatpush1.msra.mxu0 0.0
    %472 = vmatprep.subr.mxu0 0.0
    %473 = vmatpush1.msra.mxu0 0.0
    %474 = vmatprep.subr.mxu0 0.0
    %475 = vmatpush1.msra.mxu0 0.0
    %476 = vmatprep.subr.mxu0 0.0
    %477 = vmatpush1.msra.mxu0 0.0
    %478 = vmatprep.subr.mxu0 0.0
    %479 = vmatpush1.msra.mxu0 0.0
    %480 = vmatprep.subr.mxu0 0.0
    %481 = vmatpush1.msra.mxu0 0.0
    %482 = vmatprep.subr.mxu0 0.0
    %483 = vmatpush1.msra.mxu0 %v357
    %484 = vmatprep.subr.mxu0 0.0
    %485 = vmatpush1.msra.mxu0 %v356
    %486 = vmatprep.subr.mxu0 0.0
    %487 = vmatpush1.msra.mxu0 %v355
    %488 = vmatprep.subr.mxu0 0.0
    %489 = vmatpush1.msra.mxu0 %v354
    %490 = vmatprep.subr.mxu0 0.0
    %491 = vmatpush2.msra.mxu0 0.0
    %492 = vmatprep.subr.mxu0 0.0
    %493 = vmatpush2.msra.mxu0 0.0
    %494 = vmatprep.subr.mxu0 0.0
    %495 = vmatpush2.msra.mxu0 0.0
    %496 = vmatprep.subr.mxu0 0.0
    %497 = vmatpush2.msra.mxu0 0.0
    %498 = vmatprep.subr.mxu0 0.0
    %499 = vmatpush2.msra.mxu0 0.0
    %500 = vmatprep.subr.mxu0 0.0
    %501 = vmatpush2.msra.mxu0 0.0
    %502 = vmatprep.subr.mxu0 0.0
    %503 = vmatpush2.msra.mxu0 0.0
    %504 = vmatprep.subr.mxu0 0.0
    %505 = vmatpush2.msra.mxu0 0.0
    %506 = vmatprep.subr.mxu0 0.0
    %507 = vmatpush2.msra.mxu0 0.0
    %508 = vmatprep.subr.mxu0 0.0
    %509 = vmatpush2.msra.mxu0 0.0
    %510 = vmatprep.subr.mxu0 0.0
    %511 = vmatpush2.msra.mxu0 0.0
    %512 = vmatprep.subr.mxu0 0.0
    %513 = vmatpush2.msra.mxu0 0.0
    %514 = vmatprep.subr.mxu0 0.0
    %515 = vmatpush2.msra.mxu0 0.0
    %516 = vmatprep.subr.mxu0 0.0
    %517 = vmatpush2.msra.mxu0 0.0
    %518 = vmatprep.subr.mxu0 0.0
    %519 = vmatpush2.msra.mxu0 0.0
    %520 = vmatprep.subr.mxu0 0.0
    %521 = vmatpush2.msra.mxu0 0.0
    %522 = vmatprep.mubr.f32.mxu0 0.0
    %523 = vmatmul.mubr.f32.gmra.mxu0 %v456
    %v524 = vpop.f32.mrf.mxu0
    %v525 = vadd.f32 %v431, %v524
    %v526 = vpop.f32.mrf.mxu0
    %527 = vdwg.mxu0
    %v528 = vld [vmem:[%s7] sm:$0x1]
    %v530 = vlaneseq
    %v531 = vshrl.u32 %v530, 7
    %v532 = vsub.s32 0, %v531
    %v533 = vrot.slane %v528, %v532
    %v535 = vadd.f32 %v525, %v533
    %v536 = vxor.u32 %v535, 2147483648
    %v537 = vmul.f32 %v536, 1.442695
    %v538 = vpow.pop %v537
    %v539 = vadd.f32 %v538, 1.0
    %v540 = vrcp.pop %v539
    %v541 = vmul.f32 1.0, %v540
    %v542 = vsel %vm297, %v541, 0.0
    %543 = vadd.xlane.f32.xlu0 %v542
    %v544 = vpop.xlane.xlu0 %543
    %v545 = vmul.f32 %v544, 0.03125
    %vm546 = vcmask 7168
    %547 = vst.msk [vmem:[%s20] sm:$0xff] %vm546, %v545
    %v548 = vsub.f32 %v223, 0.3
    %v549 = vmul.f32 %v548, 10.0
    %v550 = vxor.u32 %v549, 2147483648
    %v551 = vmul.f32 %v550, 1.442695
    %v552 = vpow.pop %v551
    %v553 = vadd.f32 %v552, 1.0
    %v554 = vrcp.pop %v553
    %v555 = vmul.f32 1.0, %v554
    %v556 = vmul.f32 %v555, 0.7
    %v557 = vadd.f32 %v556, 0.3
    %v558 = vld [vmem:[%s11] sm:$0x7]
    %vm559 = vcmask 23552
    %v561 = vsel %vm559, %v557, 0
    %vm563 = vcmask 1042432
    %v565 = vsel %vm563, %v558, 0
    %567 = vmatprep.subr.mxu0 0.0
    %568 = vmatpush1.msra.mxu0 0.0
    %569 = vmatprep.subr.mxu0 0.0
    %570 = vmatpush1.msra.mxu0 0.0
    %571 = vmatprep.subr.mxu0 0.0
    %572 = vmatpush1.msra.mxu0 0.0
    %573 = vmatprep.subr.mxu0 0.0
    %574 = vmatpush1.msra.mxu0 0.0
    %575 = vmatprep.subr.mxu0 0.0
    %576 = vmatpush1.msra.mxu0 0.0
    %577 = vmatprep.subr.mxu0 0.0
    %578 = vmatpush1.msra.mxu0 0.0
    %579 = vmatprep.subr.mxu0 0.0
    %580 = vmatpush1.msra.mxu0 0.0
    %581 = vmatprep.subr.mxu0 0.0
    %582 = vmatpush1.msra.mxu0 0.0
    %583 = vmatprep.subr.mxu0 0.0
    %584 = vmatpush1.msra.mxu0 0.0
    %585 = vmatprep.subr.mxu0 0.0
    %586 = vmatpush1.msra.mxu0 0.0
    %587 = vmatprep.subr.mxu0 0.0
    %588 = vmatpush1.msra.mxu0 0.0
    %589 = vmatprep.subr.mxu0 0.0
    %590 = vmatpush1.msra.mxu0 0.0
    %591 = vmatprep.subr.mxu0 0.0
    %592 = vmatpush1.msra.mxu0 0.0
    %593 = vmatprep.subr.mxu0 0.0
    %594 = vmatpush1.msra.mxu0 0.0
    %595 = vmatprep.subr.mxu0 0.0
    %596 = vmatpush1.msra.mxu0 0.0
    %597 = vmatprep.subr.mxu0 0.0
    %598 = vmatpush1.msra.mxu0 %v565
    %599 = vmatprep.subr.mxu0 0.0
    %600 = vmatpush2.msra.mxu0 0.0
    %601 = vmatprep.subr.mxu0 0.0
    %602 = vmatpush2.msra.mxu0 0.0
    %603 = vmatprep.subr.mxu0 0.0
    %604 = vmatpush2.msra.mxu0 0.0
    %605 = vmatprep.subr.mxu0 0.0
    %606 = vmatpush2.msra.mxu0 0.0
    %607 = vmatprep.subr.mxu0 0.0
    %608 = vmatpush2.msra.mxu0 0.0
    %609 = vmatprep.subr.mxu0 0.0
    %610 = vmatpush2.msra.mxu0 0.0
    %611 = vmatprep.subr.mxu0 0.0
    %612 = vmatpush2.msra.mxu0 0.0
    %613 = vmatprep.subr.mxu0 0.0
    %614 = vmatpush2.msra.mxu0 0.0
    %615 = vmatprep.subr.mxu0 0.0
    %616 = vmatpush2.msra.mxu0 0.0
    %617 = vmatprep.subr.mxu0 0.0
    %618 = vmatpush2.msra.mxu0 0.0
    %619 = vmatprep.subr.mxu0 0.0
    %620 = vmatpush2.msra.mxu0 0.0
    %621 = vmatprep.subr.mxu0 0.0
    %622 = vmatpush2.msra.mxu0 0.0
    %623 = vmatprep.subr.mxu0 0.0
    %624 = vmatpush2.msra.mxu0 0.0
    %625 = vmatprep.subr.mxu0 0.0
    %626 = vmatpush2.msra.mxu0 0.0
    %627 = vmatprep.subr.mxu0 0.0
    %628 = vmatpush2.msra.mxu0 0.0
    %629 = vmatprep.subr.mxu0 0.0
    %630 = vmatpush2.msra.mxu0 0.0
    %631 = vmatprep.mubr.f32.mxu0 0.0
    %632 = vmatmul.mubr.f32.gmra.mxu0 %v561
    %v633 = vpop.f32.mrf.mxu0
    %v634 = vadd.f32 0.0, %v633
    %v635 = vpop.f32.mrf.mxu0
    %636 = vdwg.mxu0
    %v637 = vld [vmem:[#allocation11] sm:$0xff]
    %v638 = vld [vmem:[#allocation11 + $0x8] sm:$0xff]
    %v639 = vld [vmem:[#allocation11 + $0x10] sm:$0xff]
    %v640 = vld [vmem:[#allocation11 + $0x18] sm:$0xff]
    %v641 = vld [vmem:[#allocation13] sm:$0xff]
    %v642 = vld [vmem:[#allocation13 + $0x8] sm:$0xff]
    %v643 = vld [vmem:[#allocation13 + $0x10] sm:$0xff]
    %v644 = vld [vmem:[#allocation13 + $0x18] sm:$0xff]
    %v646 = vsel %vm297, %v221, 0
    %648 = vmatprep.subr.mxu0 0.0
    %649 = vmatpush1.msra.mxu0 0.0
    %650 = vmatprep.subr.mxu0 0.0
    %651 = vmatpush1.msra.mxu0 0.0
    %652 = vmatprep.subr.mxu0 0.0
    %653 = vmatpush1.msra.mxu0 0.0
    %654 = vmatprep.subr.mxu0 0.0
    %655 = vmatpush1.msra.mxu0 0.0
    %656 = vmatprep.subr.mxu0 0.0
    %657 = vmatpush1.msra.mxu0 0.0
    %658 = vmatprep.subr.mxu0 0.0
    %659 = vmatpush1.msra.mxu0 0.0
    %660 = vmatprep.subr.mxu0 0.0
    %661 = vmatpush1.msra.mxu0 0.0
    %662 = vmatprep.subr.mxu0 0.0
    %663 = vmatpush1.msra.mxu0 0.0
    %664 = vmatprep.subr.mxu0 0.0
    %665 = vmatpush1.msra.mxu0 0.0
    %666 = vmatprep.subr.mxu0 0.0
    %667 = vmatpush1.msra.mxu0 0.0
    %668 = vmatprep.subr.mxu0 0.0
    %669 = vmatpush1.msra.mxu0 0.0
    %670 = vmatprep.subr.mxu0 0.0
    %671 = vmatpush1.msra.mxu0 0.0
    %672 = vmatprep.subr.mxu0 0.0
    %673 = vmatpush1.msra.mxu0 %v644
    %674 = vmatprep.subr.mxu0 0.0
    %675 = vmatpush1.msra.mxu0 %v643
    %676 = vmatprep.subr.mxu0 0.0
    %677 = vmatpush1.msra.mxu0 %v642
    %678 = vmatprep.subr.mxu0 0.0
    %679 = vmatpush1.msra.mxu0 %v641
    %680 = vmatprep.subr.mxu0 0.0
    %681 = vmatpush2.msra.mxu0 0.0
    %682 = vmatprep.subr.mxu0 0.0
    %683 = vmatpush2.msra.mxu0 0.0
    %684 = vmatprep.subr.mxu0 0.0
    %685 = vmatpush2.msra.mxu0 0.0
    %686 = vmatprep.subr.mxu0 0.0
    %687 = vmatpush2.msra.mxu0 0.0
    %688 = vmatprep.subr.mxu0 0.0
    %689 = vmatpush2.msra.mxu0 0.0
    %690 = vmatprep.subr.mxu0 0.0
    %691 = vmatpush2.msra.mxu0 0.0
    %692 = vmatprep.subr.mxu0 0.0
    %693 = vmatpush2.msra.mxu0 0.0
    %694 = vmatprep.subr.mxu0 0.0
    %695 = vmatpush2.msra.mxu0 0.0
    %696 = vmatprep.subr.mxu0 0.0
    %697 = vmatpush2.msra.mxu0 0.0
    %698 = vmatprep.subr.mxu0 0.0
    %699 = vmatpush2.msra.mxu0 0.0
    %700 = vmatprep.subr.mxu0 0.0
    %701 = vmatpush2.msra.mxu0 0.0
    %702 = vmatprep.subr.mxu0 0.0
    %703 = vmatpush2.msra.mxu0 0.0
    %704 = vmatprep.subr.mxu0 0.0
    %705 = vmatpush2.msra.mxu0 0.0
    %706 = vmatprep.subr.mxu0 0.0
    %707 = vmatpush2.msra.mxu0 0.0
    %708 = vmatprep.subr.mxu0 0.0
    %709 = vmatpush2.msra.mxu0 0.0
    %710 = vmatprep.subr.mxu0 0.0
    %711 = vmatpush2.msra.mxu0 0.0
    %712 = vmatprep.mubr.f32.mxu0 0.0
    %713 = vmatmul.mubr.f32.gmra.mxu0 %v646
    %v714 = vpop.f32.mrf.mxu0
    %v715 = vadd.f32 0.0, %v714
    %v716 = vpop.f32.mrf.mxu0
    %717 = vdwg.mxu0
    %718 = vmatprep.subr.mxu0 0.0
    %719 = vmatpush1.msra.mxu0 0.0
    %720 = vmatprep.subr.mxu0 0.0
    %721 = vmatpush1.msra.mxu0 0.0
    %722 = vmatprep.subr.mxu0 0.0
    %723 = vmatpush1.msra.mxu0 0.0
    %724 = vmatprep.subr.mxu0 0.0
    %725 = vmatpush1.msra.mxu0 0.0
    %726 = vmatprep.subr.mxu0 0.0
    %727 = vmatpush1.msra.mxu0 0.0
    %728 = vmatprep.subr.mxu0 0.0
    %729 = vmatpush1.msra.mxu0 0.0
    %730 = vmatprep.subr.mxu0 0.0
    %731 = vmatpush1.msra.mxu0 0.0
    %732 = vmatprep.subr.mxu0 0.0
    %733 = vmatpush1.msra.mxu0 0.0
    %734 = vmatprep.subr.mxu0 0.0
    %735 = vmatpush1.msra.mxu0 0.0
    %736 = vmatprep.subr.mxu0 0.0
    %737 = vmatpush1.msra.mxu0 0.0
    %738 = vmatprep.subr.mxu0 0.0
    %739 = vmatpush1.msra.mxu0 0.0
    %740 = vmatprep.subr.mxu0 0.0
    %741 = vmatpush1.msra.mxu0 0.0
    %742 = vmatprep.subr.mxu0 0.0
    %743 = vmatpush1.msra.mxu0 %v640
    %744 = vmatprep.subr.mxu0 0.0
    %745 = vmatpush1.msra.mxu0 %v639
    %746 = vmatprep.subr.mxu0 0.0
    %747 = vmatpush1.msra.mxu0 %v638
    %748 = vmatprep.subr.mxu0 0.0
    %749 = vmatpush1.msra.mxu0 %v637
    %750 = vmatprep.subr.mxu0 0.0
    %751 = vmatpush2.msra.mxu0 0.0
    %752 = vmatprep.subr.mxu0 0.0
    %753 = vmatpush2.msra.mxu0 0.0
    %754 = vmatprep.subr.mxu0 0.0
    %755 = vmatpush2.msra.mxu0 0.0
    %756 = vmatprep.subr.mxu0 0.0
    %757 = vmatpush2.msra.mxu0 0.0
    %758 = vmatprep.subr.mxu0 0.0
    %759 = vmatpush2.msra.mxu0 0.0
    %760 = vmatprep.subr.mxu0 0.0
    %761 = vmatpush2.msra.mxu0 0.0
    %762 = vmatprep.subr.mxu0 0.0
    %763 = vmatpush2.msra.mxu0 0.0
    %764 = vmatprep.subr.mxu0 0.0
    %765 = vmatpush2.msra.mxu0 0.0
    %766 = vmatprep.subr.mxu0 0.0
    %767 = vmatpush2.msra.mxu0 0.0
    %768 = vmatprep.subr.mxu0 0.0
    %769 = vmatpush2.msra.mxu0 0.0
    %770 = vmatprep.subr.mxu0 0.0
    %771 = vmatpush2.msra.mxu0 0.0
    %772 = vmatprep.subr.mxu0 0.0
    %773 = vmatpush2.msra.mxu0 0.0
    %774 = vmatprep.subr.mxu0 0.0
    %775 = vmatpush2.msra.mxu0 0.0
    %776 = vmatprep.subr.mxu0 0.0
    %777 = vmatpush2.msra.mxu0 0.0
    %778 = vmatprep.subr.mxu0 0.0
    %779 = vmatpush2.msra.mxu0 0.0
    %780 = vmatprep.subr.mxu0 0.0
    %781 = vmatpush2.msra.mxu0 0.0
    %782 = vmatprep.mubr.f32.mxu0 0.0
    %783 = vmatmul.mubr.f32.gmra.mxu0 %v456
    %v784 = vpop.f32.mrf.mxu0
    %v785 = vadd.f32 %v715, %v784
    %v786 = vpop.f32.mrf.mxu0
    %787 = vdwg.mxu0
    %v788 = vld [vmem:[#allocation14] sm:$0x1]
    %v790 = vlaneseq
    %v791 = vshrl.u32 %v790, 7
    %v792 = vsub.s32 0, %v791
    %v793 = vrot.slane %v788, %v792
    %v795 = vadd.f32 %v785, %v793
    %v796 = vmul.f32 %v795, %v634
    %v797 = vxor.u32 %v796, 2147483648
    %v798 = vmul.f32 %v797, 1.442695
    %v799 = vpow.pop %v798
    %v800 = vadd.f32 %v799, 1.0
    %v801 = vrcp.pop %v800
    %v802 = vmul.f32 1.0, %v801
    %v803 = vld [vmem:[%s12] sm:$0xff]
    %v804 = vld [vmem:[%s12 + $0x8] sm:$0xff]
    %v805 = vld [vmem:[%s12 + $0x10] sm:$0xff]
    %v806 = vld [vmem:[%s12 + $0x18] sm:$0xff]
    %v807 = vld [vmem:[#allocation16] sm:$0x1]
    %v809 = vlaneseq
    %v810 = vshrl.u32 %v809, 7
    %v811 = vsub.s32 0, %v810
    %v812 = vrot.slane %v807, %v811
    %v815 = vsel %vm297, %v802, 0
    %817 = vmatprep.subr.mxu0 0.0
    %818 = vmatpush1.msra.mxu0 0.0
    %819 = vmatprep.subr.mxu0 0.0
    %820 = vmatpush1.msra.mxu0 0.0
    %821 = vmatprep.subr.mxu0 0.0
    %822 = vmatpush1.msra.mxu0 0.0
    %823 = vmatprep.subr.mxu0 0.0
    %824 = vmatpush1.msra.mxu0 0.0
    %825 = vmatprep.subr.mxu0 0.0
    %826 = vmatpush1.msra.mxu0 0.0
    %827 = vmatprep.subr.mxu0 0.0
    %828 = vmatpush1.msra.mxu0 0.0
    %829 = vmatprep.subr.mxu0 0.0
    %830 = vmatpush1.msra.mxu0 0.0
    %831 = vmatprep.subr.mxu0 0.0
    %832 = vmatpush1.msra.mxu0 0.0
    %833 = vmatprep.subr.mxu0 0.0
    %834 = vmatpush1.msra.mxu0 0.0
    %835 = vmatprep.subr.mxu0 0.0
    %836 = vmatpush1.msra.mxu0 0.0
    %837 = vmatprep.subr.mxu0 0.0
    %838 = vmatpush1.msra.mxu0 0.0
    %839 = vmatprep.subr.mxu0 0.0
    %840 = vmatpush1.msra.mxu0 0.0
    %841 = vmatprep.subr.mxu0 0.0
    %842 = vmatpush1.msra.mxu0 %v806
    %843 = vmatprep.subr.mxu0 0.0
    %844 = vmatpush1.msra.mxu0 %v805
    %845 = vmatprep.subr.mxu0 0.0
    %846 = vmatpush1.msra.mxu0 %v804
    %847 = vmatprep.subr.mxu0 0.0
    %848 = vmatpush1.msra.mxu0 %v803
    %849 = vmatprep.subr.mxu0 0.0
    %850 = vmatpush2.msra.mxu0 0.0
    %851 = vmatprep.subr.mxu0 0.0
    %852 = vmatpush2.msra.mxu0 0.0
    %853 = vmatprep.subr.mxu0 0.0
    %854 = vmatpush2.msra.mxu0 0.0
    %855 = vmatprep.subr.mxu0 0.0
    %856 = vmatpush2.msra.mxu0 0.0
    %857 = vmatprep.subr.mxu0 0.0
    %858 = vmatpush2.msra.mxu0 0.0
    %859 = vmatprep.subr.mxu0 0.0
    %860 = vmatpush2.msra.mxu0 0.0
    %861 = vmatprep.subr.mxu0 0.0
    %862 = vmatpush2.msra.mxu0 0.0
    %863 = vmatprep.subr.mxu0 0.0
    %864 = vmatpush2.msra.mxu0 0.0
    %865 = vmatprep.subr.mxu0 0.0
    %866 = vmatpush2.msra.mxu0 0.0
    %867 = vmatprep.subr.mxu0 0.0
    %868 = vmatpush2.msra.mxu0 0.0
    %869 = vmatprep.subr.mxu0 0.0
    %870 = vmatpush2.msra.mxu0 0.0
    %871 = vmatprep.subr.mxu0 0.0
    %872 = vmatpush2.msra.mxu0 0.0
    %873 = vmatprep.subr.mxu0 0.0
    %874 = vmatpush2.msra.mxu0 0.0
    %875 = vmatprep.subr.mxu0 0.0
    %876 = vmatpush2.msra.mxu0 0.0
    %877 = vmatprep.subr.mxu0 0.0
    %878 = vmatpush2.msra.mxu0 0.0
    %879 = vmatprep.subr.mxu0 0.0
    %880 = vmatpush2.msra.mxu0 0.0
    %881 = vmatprep.mubr.f32.mxu0 0.0
    %882 = vmatmul.mubr.f32.gmra.mxu0 %v815
    %v883 = vpop.f32.mrf.mxu0
    %v884 = vadd.f32 %v812, %v883
    %v885 = vpop.f32.mrf.mxu0
    %886 = vdwg.mxu0
    %s887 = scalar_lea.vmem %s12, 32
    %v888 = vld [vmem:[%s887] sm:$0xff]
    %v889 = vld [vmem:[%s887 + $0x8] sm:$0xff]
    %v890 = vld [vmem:[%s887 + $0x10] sm:$0xff]
    %v891 = vld [vmem:[%s887 + $0x18] sm:$0xff]
    %s892 = scalar_lea.vmem [#allocation16], 1
    %v893 = vld [vmem:[%s892] sm:$0x1]
    %v895 = vlaneseq
    %v896 = vshrl.u32 %v895, 7
    %v897 = vsub.s32 0, %v896
    %v898 = vrot.slane %v893, %v897
    %900 = vrot.lane.b32.xlu0 %v802, 96
    %v901 = vpop.permute.xlu0 %900
    %v902 = vsel %vm297, %v901, 0
    %904 = vmatprep.subr.mxu0 0.0
    %905 = vmatpush1.msra.mxu0 0.0
    %906 = vmatprep.subr.mxu0 0.0
    %907 = vmatpush1.msra.mxu0 0.0
    %908 = vmatprep.subr.mxu0 0.0
    %909 = vmatpush1.msra.mxu0 0.0
    %910 = vmatprep.subr.mxu0 0.0
    %911 = vmatpush1.msra.mxu0 0.0
    %912 = vmatprep.subr.mxu0 0.0
    %913 = vmatpush1.msra.mxu0 0.0
    %914 = vmatprep.subr.mxu0 0.0
    %915 = vmatpush1.msra.mxu0 0.0
    %916 = vmatprep.subr.mxu0 0.0
    %917 = vmatpush1.msra.mxu0 0.0
    %918 = vmatprep.subr.mxu0 0.0
    %919 = vmatpush1.msra.mxu0 0.0
    %920 = vmatprep.subr.mxu0 0.0
    %921 = vmatpush1.msra.mxu0 0.0
    %922 = vmatprep.subr.mxu0 0.0
    %923 = vmatpush1.msra.mxu0 0.0
    %924 = vmatprep.subr.mxu0 0.0
    %925 = vmatpush1.msra.mxu0 0.0
    %926 = vmatprep.subr.mxu0 0.0
    %927 = vmatpush1.msra.mxu0 0.0
    %928 = vmatprep.subr.mxu0 0.0
    %929 = vmatpush1.msra.mxu0 %v891
    %930 = vmatprep.subr.mxu0 0.0
    %931 = vmatpush1.msra.mxu0 %v890
    %932 = vmatprep.subr.mxu0 0.0
    %933 = vmatpush1.msra.mxu0 %v889
    %934 = vmatprep.subr.mxu0 0.0
    %935 = vmatpush1.msra.mxu0 %v888
    %936 = vmatprep.subr.mxu0 0.0
    %937 = vmatpush2.msra.mxu0 0.0
    %938 = vmatprep.subr.mxu0 0.0
    %939 = vmatpush2.msra.mxu0 0.0
    %940 = vmatprep.subr.mxu0 0.0
    %941 = vmatpush2.msra.mxu0 0.0
    %942 = vmatprep.subr.mxu0 0.0
    %943 = vmatpush2.msra.mxu0 0.0
    %944 = vmatprep.subr.mxu0 0.0
    %945 = vmatpush2.msra.mxu0 0.0
    %946 = vmatprep.subr.mxu0 0.0
    %947 = vmatpush2.msra.mxu0 0.0
    %948 = vmatprep.subr.mxu0 0.0
    %949 = vmatpush2.msra.mxu0 0.0
    %950 = vmatprep.subr.mxu0 0.0
    %951 = vmatpush2.msra.mxu0 0.0
    %952 = vmatprep.subr.mxu0 0.0
    %953 = vmatpush2.msra.mxu0 0.0
    %954 = vmatprep.subr.mxu0 0.0
    %955 = vmatpush2.msra.mxu0 0.0
    %956 = vmatprep.subr.mxu0 0.0
    %957 = vmatpush2.msra.mxu0 0.0
    %958 = vmatprep.subr.mxu0 0.0
    %959 = vmatpush2.msra.mxu0 0.0
    %960 = vmatprep.subr.mxu0 0.0
    %961 = vmatpush2.msra.mxu0 0.0
    %962 = vmatprep.subr.mxu0 0.0
    %963 = vmatpush2.msra.mxu0 0.0
    %964 = vmatprep.subr.mxu0 0.0
    %965 = vmatpush2.msra.mxu0 0.0
    %966 = vmatprep.subr.mxu0 0.0
    %967 = vmatpush2.msra.mxu0 0.0
    %968 = vmatprep.mubr.f32.mxu0 0.0
    %969 = vmatmul.mubr.f32.gmra.mxu0 %v902
    %v970 = vpop.f32.mrf.mxu0
    %v971 = vadd.f32 %v898, %v970
    %v972 = vpop.f32.mrf.mxu0
    %973 = vdwg.mxu0
    %v974 = vmul.f32 %v884, %v971
    %s975 = scalar_lea.vmem %s12, 64
    %v976 = vld [vmem:[%s975] sm:$0xff]
    %v977 = vld [vmem:[%s975 + $0x8] sm:$0xff]
    %v978 = vld [vmem:[%s975 + $0x10] sm:$0xff]
    %v979 = vld [vmem:[%s975 + $0x18] sm:$0xff]
    %s980 = scalar_lea.vmem [#allocation16], 2
    %v981 = vld [vmem:[%s980] sm:$0x1]
    %v983 = vlaneseq
    %v984 = vshrl.u32 %v983, 7
    %v985 = vsub.s32 0, %v984
    %v986 = vrot.slane %v981, %v985
    %988 = vrot.lane.b32.xlu0 %v802, 64
    %v989 = vpop.permute.xlu0 %988
    %v990 = vsel %vm297, %v989, 0
    %992 = vmatprep.subr.mxu0 0.0
    %993 = vmatpush1.msra.mxu0 0.0
    %994 = vmatprep.subr.mxu0 0.0
    %995 = vmatpush1.msra.mxu0 0.0
    %996 = vmatprep.subr.mxu0 0.0
    %997 = vmatpush1.msra.mxu0 0.0
    %998 = vmatprep.subr.mxu0 0.0
    %999 = vmatpush1.msra.mxu0 0.0
    %1000 = vmatprep.subr.mxu0 0.0
    %1001 = vmatpush1.msra.mxu0 0.0
    %1002 = vmatprep.subr.mxu0 0.0
    %1003 = vmatpush1.msra.mxu0 0.0
    %1004 = vmatprep.subr.mxu0 0.0
    %1005 = vmatpush1.msra.mxu0 0.0
    %1006 = vmatprep.subr.mxu0 0.0
    %1007 = vmatpush1.msra.mxu0 0.0
    %1008 = vmatprep.subr.mxu0 0.0
    %1009 = vmatpush1.msra.mxu0 0.0
    %1010 = vmatprep.subr.mxu0 0.0
    %1011 = vmatpush1.msra.mxu0 0.0
    %1012 = vmatprep.subr.mxu0 0.0
    %1013 = vmatpush1.msra.mxu0 0.0
    %1014 = vmatprep.subr.mxu0 0.0
    %1015 = vmatpush1.msra.mxu0 0.0
    %1016 = vmatprep.subr.mxu0 0.0
    %1017 = vmatpush1.msra.mxu0 %v979
    %1018 = vmatprep.subr.mxu0 0.0
    %1019 = vmatpush1.msra.mxu0 %v978
    %1020 = vmatprep.subr.mxu0 0.0
    %1021 = vmatpush1.msra.mxu0 %v977
    %1022 = vmatprep.subr.mxu0 0.0
    %1023 = vmatpush1.msra.mxu0 %v976
    %1024 = vmatprep.subr.mxu0 0.0
    %1025 = vmatpush2.msra.mxu0 0.0
    %1026 = vmatprep.subr.mxu0 0.0
    %1027 = vmatpush2.msra.mxu0 0.0
    %1028 = vmatprep.subr.mxu0 0.0
    %1029 = vmatpush2.msra.mxu0 0.0
    %1030 = vmatprep.subr.mxu0 0.0
    %1031 = vmatpush2.msra.mxu0 0.0
    %1032 = vmatprep.subr.mxu0 0.0
    %1033 = vmatpush2.msra.mxu0 0.0
    %1034 = vmatprep.subr.mxu0 0.0
    %1035 = vmatpush2.msra.mxu0 0.0
    %1036 = vmatprep.subr.mxu0 0.0
    %1037 = vmatpush2.msra.mxu0 0.0
    %1038 = vmatprep.subr.mxu0 0.0
    %1039 = vmatpush2.msra.mxu0 0.0
    %1040 = vmatprep.subr.mxu0 0.0
    %1041 = vmatpush2.msra.mxu0 0.0
    %1042 = vmatprep.subr.mxu0 0.0
    %1043 = vmatpush2.msra.mxu0 0.0
    %1044 = vmatprep.subr.mxu0 0.0
    %1045 = vmatpush2.msra.mxu0 0.0
    %1046 = vmatprep.subr.mxu0 0.0
    %1047 = vmatpush2.msra.mxu0 0.0
    %1048 = vmatprep.subr.mxu0 0.0
    %1049 = vmatpush2.msra.mxu0 0.0
    %1050 = vmatprep.subr.mxu0 0.0
    %1051 = vmatpush2.msra.mxu0 0.0
    %1052 = vmatprep.subr.mxu0 0.0
    %1053 = vmatpush2.msra.mxu0 0.0
    %1054 = vmatprep.subr.mxu0 0.0
    %1055 = vmatpush2.msra.mxu0 0.0
    %1056 = vmatprep.mubr.f32.mxu0 0.0
    %1057 = vmatmul.mubr.f32.gmra.mxu0 %v990
    %v1058 = vpop.f32.mrf.mxu0
    %v1059 = vadd.f32 %v986, %v1058
    %v1060 = vpop.f32.mrf.mxu0
    %1061 = vdwg.mxu0
    %v1062 = vmul.f32 %v974, %v1059
    %v1063 = vld [vmem:[%s14] sm:$0xff]
    %v1064 = vld [vmem:[%s14 + $0x8] sm:$0xff]
    %v1065 = vld [vmem:[%s14 + $0x10] sm:$0xff]
    %v1066 = vld [vmem:[%s14 + $0x18] sm:$0xff]
    %v1067 = vld [vmem:[%s14 + $0x20] sm:$0xff]
    %v1068 = vld [vmem:[%s14 + $0x28] sm:$0xff]
    %v1069 = vld [vmem:[%s14 + $0x30] sm:$0xff]
    %v1070 = vld [vmem:[%s14 + $0x38] sm:$0xff]
    %v1071 = vld [vmem:[%s14 + $0x40] sm:$0xff]
    %v1072 = vld [vmem:[%s14 + $0x48] sm:$0xff]
    %v1073 = vld [vmem:[%s14 + $0x50] sm:$0xff]
    %v1074 = vld [vmem:[%s14 + $0x58] sm:$0xff]
    %v1075 = vld [vmem:[%s14 + $0x60] sm:$0xff]
    %v1076 = vld [vmem:[%s14 + $0x68] sm:$0xff]
    %v1077 = vld [vmem:[%s14 + $0x70] sm:$0xff]
    %v1078 = vld [vmem:[%s14 + $0x78] sm:$0xff]
    %v1079 = vld [vmem:[#allocation17] sm:$0x1]
    %v1081 = vlaneseq
    %v1082 = vshrl.u32 %v1081, 7
    %v1083 = vsub.s32 0, %v1082
    %v1084 = vrot.slane %v1079, %v1083
    %1086 = vmatprep.subr.mxu0 0.0
    %1087 = vmatpush1.msra.mxu0 %v1078
    %1088 = vmatprep.subr.mxu0 0.0
    %1089 = vmatpush1.msra.mxu0 %v1077
    %1090 = vmatprep.subr.mxu0 0.0
    %1091 = vmatpush1.msra.mxu0 %v1076
    %1092 = vmatprep.subr.mxu0 0.0
    %1093 = vmatpush1.msra.mxu0 %v1075
    %1094 = vmatprep.subr.mxu0 0.0
    %1095 = vmatpush1.msra.mxu0 %v1074
    %1096 = vmatprep.subr.mxu0 0.0
    %1097 = vmatpush1.msra.mxu0 %v1073
    %1098 = vmatprep.subr.mxu0 0.0
    %1099 = vmatpush1.msra.mxu0 %v1072
    %1100 = vmatprep.subr.mxu0 0.0
    %1101 = vmatpush1.msra.mxu0 %v1071
    %1102 = vmatprep.subr.mxu0 0.0
    %1103 = vmatpush1.msra.mxu0 %v1070
    %1104 = vmatprep.subr.mxu0 0.0
    %1105 = vmatpush1.msra.mxu0 %v1069
    %1106 = vmatprep.subr.mxu0 0.0
    %1107 = vmatpush1.msra.mxu0 %v1068
    %1108 = vmatprep.subr.mxu0 0.0
    %1109 = vmatpush1.msra.mxu0 %v1067
    %1110 = vmatprep.subr.mxu0 0.0
    %1111 = vmatpush1.msra.mxu0 %v1066
    %1112 = vmatprep.subr.mxu0 0.0
    %1113 = vmatpush1.msra.mxu0 %v1065
    %1114 = vmatprep.subr.mxu0 0.0
    %1115 = vmatpush1.msra.mxu0 %v1064
    %1116 = vmatprep.subr.mxu0 0.0
    %1117 = vmatpush1.msra.mxu0 %v1063
    %1118 = vmatprep.subr.mxu0 0.0
    %1119 = vmatpush2.msra.mxu0 0.0
    %1120 = vmatprep.subr.mxu0 0.0
    %1121 = vmatpush2.msra.mxu0 0.0
    %1122 = vmatprep.subr.mxu0 0.0
    %1123 = vmatpush2.msra.mxu0 0.0
    %1124 = vmatprep.subr.mxu0 0.0
    %1125 = vmatpush2.msra.mxu0 0.0
    %1126 = vmatprep.subr.mxu0 0.0
    %1127 = vmatpush2.msra.mxu0 0.0
    %1128 = vmatprep.subr.mxu0 0.0
    %1129 = vmatpush2.msra.mxu0 0.0
    %1130 = vmatprep.subr.mxu0 0.0
    %1131 = vmatpush2.msra.mxu0 0.0
    %1132 = vmatprep.subr.mxu0 0.0
    %1133 = vmatpush2.msra.mxu0 0.0
    %1134 = vmatprep.subr.mxu0 0.0
    %1135 = vmatpush2.msra.mxu0 0.0
    %1136 = vmatprep.subr.mxu0 0.0
    %1137 = vmatpush2.msra.mxu0 0.0
    %1138 = vmatprep.subr.mxu0 0.0
    %1139 = vmatpush2.msra.mxu0 0.0
    %1140 = vmatprep.subr.mxu0 0.0
    %1141 = vmatpush2.msra.mxu0 0.0
    %1142 = vmatprep.subr.mxu0 0.0
    %1143 = vmatpush2.msra.mxu0 0.0
    %1144 = vmatprep.subr.mxu0 0.0
    %1145 = vmatpush2.msra.mxu0 0.0
    %1146 = vmatprep.subr.mxu0 0.0
    %1147 = vmatpush2.msra.mxu0 0.0
    %1148 = vmatprep.subr.mxu0 0.0
    %1149 = vmatpush2.msra.mxu0 0.0
    %1150 = vmatprep.mubr.f32.mxu0 0.0
    %1151 = vmatmul.mubr.f32.gmra.mxu0 %v1062
    %v1152 = vpop.f32.mrf.mxu0
    %v1153 = vadd.f32 %v1084, %v1152
    %v1154 = vpop.f32.mrf.mxu0
    %1155 = vdwg.mxu0
    %v1156 = vmax.f32 %v1153, 0.0
    %v1157 = vld [vmem:[#allocation20] sm:$0xff]
    %v1158 = vld [vmem:[#allocation20 + $0x8] sm:$0xff]
    %v1159 = vld [vmem:[#allocation20 + $0x10] sm:$0xff]
    %v1160 = vld [vmem:[#allocation20 + $0x18] sm:$0xff]
    %v1161 = vld [vmem:[%s18] sm:$0x7]
    %v1163 = vsel %vm559, %v223, 0
    %v1166 = vsel %vm563, %v1161, 0
    %1168 = vmatprep.subr.mxu0 0.0
    %1169 = vmatpush1.msra.mxu0 0.0
    %1170 = vmatprep.subr.mxu0 0.0
    %1171 = vmatpush1.msra.mxu0 0.0
    %1172 = vmatprep.subr.mxu0 0.0
    %1173 = vmatpush1.msra.mxu0 0.0
    %1174 = vmatprep.subr.mxu0 0.0
    %1175 = vmatpush1.msra.mxu0 0.0
    %1176 = vmatprep.subr.mxu0 0.0
    %1177 = vmatpush1.msra.mxu0 0.0
    %1178 = vmatprep.subr.mxu0 0.0
    %1179 = vmatpush1.msra.mxu0 0.0
    %1180 = vmatprep.subr.mxu0 0.0
    %1181 = vmatpush1.msra.mxu0 0.0
    %1182 = vmatprep.subr.mxu0 0.0
    %1183 = vmatpush1.msra.mxu0 0.0
    %1184 = vmatprep.subr.mxu0 0.0
    %1185 = vmatpush1.msra.mxu0 0.0
    %1186 = vmatprep.subr.mxu0 0.0
    %1187 = vmatpush1.msra.mxu0 0.0
    %1188 = vmatprep.subr.mxu0 0.0
    %1189 = vmatpush1.msra.mxu0 0.0
    %1190 = vmatprep.subr.mxu0 0.0
    %1191 = vmatpush1.msra.mxu0 0.0
    %1192 = vmatprep.subr.mxu0 0.0
    %1193 = vmatpush1.msra.mxu0 0.0
    %1194 = vmatprep.subr.mxu0 0.0
    %1195 = vmatpush1.msra.mxu0 0.0
    %1196 = vmatprep.subr.mxu0 0.0
    %1197 = vmatpush1.msra.mxu0 0.0
    %1198 = vmatprep.subr.mxu0 0.0
    %1199 = vmatpush1.msra.mxu0 %v1166
    %1200 = vmatprep.subr.mxu0 0.0
    %1201 = vmatpush2.msra.mxu0 0.0
    %1202 = vmatprep.subr.mxu0 0.0
    %1203 = vmatpush2.msra.mxu0 0.0
    %1204 = vmatprep.subr.mxu0 0.0
    %1205 = vmatpush2.msra.mxu0 0.0
    %1206 = vmatprep.subr.mxu0 0.0
    %1207 = vmatpush2.msra.mxu0 0.0
    %1208 = vmatprep.subr.mxu0 0.0
    %1209 = vmatpush2.msra.mxu0 0.0
    %1210 = vmatprep.subr.mxu0 0.0
    %1211 = vmatpush2.msra.mxu0 0.0
    %1212 = vmatprep.subr.mxu0 0.0
    %1213 = vmatpush2.msra.mxu0 0.0
    %1214 = vmatprep.subr.mxu0 0.0
    %1215 = vmatpush2.msra.mxu0 0.0
    %1216 = vmatprep.subr.mxu0 0.0
    %1217 = vmatpush2.msra.mxu0 0.0
    %1218 = vmatprep.subr.mxu0 0.0
    %1219 = vmatpush2.msra.mxu0 0.0
    %1220 = vmatprep.subr.mxu0 0.0
    %1221 = vmatpush2.msra.mxu0 0.0
    %1222 = vmatprep.subr.mxu0 0.0
    %1223 = vmatpush2.msra.mxu0 0.0
    %1224 = vmatprep.subr.mxu0 0.0
    %1225 = vmatpush2.msra.mxu0 0.0
    %1226 = vmatprep.subr.mxu0 0.0
    %1227 = vmatpush2.msra.mxu0 0.0
    %1228 = vmatprep.subr.mxu0 0.0
    %1229 = vmatpush2.msra.mxu0 0.0
    %1230 = vmatprep.subr.mxu0 0.0
    %1231 = vmatpush2.msra.mxu0 0.0
    %1232 = vmatprep.mubr.f32.mxu0 0.0
    %1233 = vmatmul.mubr.f32.gmra.mxu0 %v1163
    %v1234 = vpop.f32.mrf.mxu0
    %v1235 = vadd.f32 0.0, %v1234
    %v1236 = vpop.f32.mrf.mxu0
    %1237 = vdwg.mxu0
    %1238 = vmatprep.subr.mxu0 0.0
    %1239 = vmatpush1.msra.mxu0 0.0
    %1240 = vmatprep.subr.mxu0 0.0
    %1241 = vmatpush1.msra.mxu0 0.0
    %1242 = vmatprep.subr.mxu0 0.0
    %1243 = vmatpush1.msra.mxu0 0.0
    %1244 = vmatprep.subr.mxu0 0.0
    %1245 = vmatpush1.msra.mxu0 0.0
    %1246 = vmatprep.subr.mxu0 0.0
    %1247 = vmatpush1.msra.mxu0 0.0
    %1248 = vmatprep.subr.mxu0 0.0
    %1249 = vmatpush1.msra.mxu0 0.0
    %1250 = vmatprep.subr.mxu0 0.0
    %1251 = vmatpush1.msra.mxu0 0.0
    %1252 = vmatprep.subr.mxu0 0.0
    %1253 = vmatpush1.msra.mxu0 0.0
    %1254 = vmatprep.subr.mxu0 0.0
    %1255 = vmatpush1.msra.mxu0 0.0
    %1256 = vmatprep.subr.mxu0 0.0
    %1257 = vmatpush1.msra.mxu0 0.0
    %1258 = vmatprep.subr.mxu0 0.0
    %1259 = vmatpush1.msra.mxu0 0.0
    %1260 = vmatprep.subr.mxu0 0.0
    %1261 = vmatpush1.msra.mxu0 0.0
    %1262 = vmatprep.subr.mxu0 0.0
    %1263 = vmatpush1.msra.mxu0 %v1160
    %1264 = vmatprep.subr.mxu0 0.0
    %1265 = vmatpush1.msra.mxu0 %v1159
    %1266 = vmatprep.subr.mxu0 0.0
    %1267 = vmatpush1.msra.mxu0 %v1158
    %1268 = vmatprep.subr.mxu0 0.0
    %1269 = vmatpush1.msra.mxu0 %v1157
    %1270 = vmatprep.subr.mxu0 0.0
    %1271 = vmatpush2.msra.mxu0 0.0
    %1272 = vmatprep.subr.mxu0 0.0
    %1273 = vmatpush2.msra.mxu0 0.0
    %1274 = vmatprep.subr.mxu0 0.0
    %1275 = vmatpush2.msra.mxu0 0.0
    %1276 = vmatprep.subr.mxu0 0.0
    %1277 = vmatpush2.msra.mxu0 0.0
    %1278 = vmatprep.subr.mxu0 0.0
    %1279 = vmatpush2.msra.mxu0 0.0
    %1280 = vmatprep.subr.mxu0 0.0
    %1281 = vmatpush2.msra.mxu0 0.0
    %1282 = vmatprep.subr.mxu0 0.0
    %1283 = vmatpush2.msra.mxu0 0.0
    %1284 = vmatprep.subr.mxu0 0.0
    %1285 = vmatpush2.msra.mxu0 0.0
    %1286 = vmatprep.subr.mxu0 0.0
    %1287 = vmatpush2.msra.mxu0 0.0
    %1288 = vmatprep.subr.mxu0 0.0
    %1289 = vmatpush2.msra.mxu0 0.0
    %1290 = vmatprep.subr.mxu0 0.0
    %1291 = vmatpush2.msra.mxu0 0.0
    %1292 = vmatprep.subr.mxu0 0.0
    %1293 = vmatpush2.msra.mxu0 0.0
    %1294 = vmatprep.subr.mxu0 0.0
    %1295 = vmatpush2.msra.mxu0 0.0
    %1296 = vmatprep.subr.mxu0 0.0
    %1297 = vmatpush2.msra.mxu0 0.0
    %1298 = vmatprep.subr.mxu0 0.0
    %1299 = vmatpush2.msra.mxu0 0.0
    %1300 = vmatprep.subr.mxu0 0.0
    %1301 = vmatpush2.msra.mxu0 0.0
    %1302 = vmatprep.mubr.f32.mxu0 0.0
    %1303 = vmatmul.mubr.f32.gmra.mxu0 %v646
    %v1304 = vpop.f32.mrf.mxu0
    %v1305 = vadd.f32 %v1235, %v1304
    %v1306 = vpop.f32.mrf.mxu0
    %1307 = vdwg.mxu0
    %v1308 = vld [vmem:[%s19] sm:$0x1]
    %v1310 = vlaneseq
    %v1311 = vshrl.u32 %v1310, 7
    %v1312 = vsub.s32 0, %v1311
    %v1313 = vrot.slane %v1308, %v1312
    %v1315 = vadd.f32 %v1305, %v1313
    %v1316 = vld [vmem:[#allocation19] sm:$0xff]
    %v1317 = vld [vmem:[#allocation19 + $0x8] sm:$0xff]
    %v1318 = vld [vmem:[#allocation19 + $0x10] sm:$0xff]
    %v1319 = vld [vmem:[#allocation19 + $0x18] sm:$0xff]
    %v1321 = vsel %vm297, %v225, 0
    %v1324 = vsel %vm297, %v226, 0
    %v1327 = vsel %vm297, %v227, 0
    %v1330 = vsel %vm297, %v228, 0
    %v1333 = vsel %vm297, %v229, 0
    %v1336 = vsel %vm297, %v230, 0
    %v1339 = vsel %vm297, %v231, 0
    %v1342 = vsel %vm297, %v232, 0
    %1344 = vmatprep.subr.mxu0 0.0
    %1345 = vmatpush1.msra.mxu0 0.0
    %1346 = vmatprep.subr.mxu0 0.0
    %1347 = vmatpush1.msra.mxu0 0.0
    %1348 = vmatprep.subr.mxu0 0.0
    %1349 = vmatpush1.msra.mxu0 0.0
    %1350 = vmatprep.subr.mxu0 0.0
    %1351 = vmatpush1.msra.mxu0 0.0
    %1352 = vmatprep.subr.mxu0 0.0
    %1353 = vmatpush1.msra.mxu0 0.0
    %1354 = vmatprep.subr.mxu0 0.0
    %1355 = vmatpush1.msra.mxu0 0.0
    %1356 = vmatprep.subr.mxu0 0.0
    %1357 = vmatpush1.msra.mxu0 0.0
    %1358 = vmatprep.subr.mxu0 0.0
    %1359 = vmatpush1.msra.mxu0 0.0
    %1360 = vmatprep.subr.mxu0 0.0
    %1361 = vmatpush1.msra.mxu0 0.0
    %1362 = vmatprep.subr.mxu0 0.0
    %1363 = vmatpush1.msra.mxu0 0.0
    %1364 = vmatprep.subr.mxu0 0.0
    %1365 = vmatpush1.msra.mxu0 0.0
    %1366 = vmatprep.subr.mxu0 0.0
    %1367 = vmatpush1.msra.mxu0 0.0
    %1368 = vmatprep.subr.mxu0 0.0
    %1369 = vmatpush1.msra.mxu0 %v1319
    %1370 = vmatprep.subr.mxu0 0.0
    %1371 = vmatpush1.msra.mxu0 %v1318
    %1372 = vmatprep.subr.mxu0 0.0
    %1373 = vmatpush1.msra.mxu0 %v1317
    %1374 = vmatprep.subr.mxu0 0.0
    %1375 = vmatpush1.msra.mxu0 %v1316
    %1376 = vmatprep.subr.mxu0 0.0
    %1377 = vmatpush2.msra.mxu0 0.0
    %1378 = vmatprep.subr.mxu0 0.0
    %1379 = vmatpush2.msra.mxu0 0.0
    %1380 = vmatprep.subr.mxu0 0.0
    %1381 = vmatpush2.msra.mxu0 0.0
    %1382 = vmatprep.subr.mxu0 0.0
    %1383 = vmatpush2.msra.mxu0 0.0
    %1384 = vmatprep.subr.mxu0 0.0
    %1385 = vmatpush2.msra.mxu0 0.0
    %1386 = vmatprep.subr.mxu0 0.0
    %1387 = vmatpush2.msra.mxu0 0.0
    %1388 = vmatprep.subr.mxu0 0.0
    %1389 = vmatpush2.msra.mxu0 0.0
    %1390 = vmatprep.subr.mxu0 0.0
    %1391 = vmatpush2.msra.mxu0 0.0
    %1392 = vmatprep.subr.mxu0 0.0
    %1393 = vmatpush2.msra.mxu0 0.0
    %1394 = vmatprep.subr.mxu0 0.0
    %1395 = vmatpush2.msra.mxu0 0.0
    %1396 = vmatprep.subr.mxu0 0.0
    %1397 = vmatpush2.msra.mxu0 0.0
    %1398 = vmatprep.subr.mxu0 0.0
    %1399 = vmatpush2.msra.mxu0 0.0
    %1400 = vmatprep.subr.mxu0 0.0
    %1401 = vmatpush2.msra.mxu0 0.0
    %1402 = vmatprep.subr.mxu0 0.0
    %1403 = vmatpush2.msra.mxu0 0.0
    %1404 = vmatprep.subr.mxu0 0.0
    %1405 = vmatpush2.msra.mxu0 0.0
    %1406 = vmatprep.subr.mxu0 0.0
    %1407 = vmatpush2.msra.mxu0 0.0
    %1408 = vmatprep.mubr.f32.mxu0 0.0
    %1409 = vmatmul.mubr.f32.gmra.mxu0 %v1321
    %v1410 = vpop.f32.mrf.mxu0
    %v1411 = vadd.f32 0.0, %v1410
    %v1412 = vpop.f32.mrf.mxu0
    %1413 = vmatprep.mubr.f32.mxu0 0.0
    %1414 = vmatmul.mubr.f32.gmra.mxu0 %v1324
    %v1415 = vpop.f32.mrf.mxu0
    %v1416 = vadd.f32 0.0, %v1415
    %v1417 = vpop.f32.mrf.mxu0
    %1418 = vmatprep.mubr.f32.mxu0 0.0
    %1419 = vmatmul.mubr.f32.gmra.mxu0 %v1327
    %v1420 = vpop.f32.mrf.mxu0
    %v1421 = vadd.f32 0.0, %v1420
    %v1422 = vpop.f32.mrf.mxu0
    %1423 = vmatprep.mubr.f32.mxu0 0.0
    %1424 = vmatmul.mubr.f32.gmra.mxu0 %v1330
    %v1425 = vpop.f32.mrf.mxu0
    %v1426 = vadd.f32 0.0, %v1425
    %v1427 = vpop.f32.mrf.mxu0
    %1428 = vmatprep.mubr.f32.mxu0 0.0
    %1429 = vmatmul.mubr.f32.gmra.mxu0 %v1333
    %v1430 = vpop.f32.mrf.mxu0
    %v1431 = vadd.f32 0.0, %v1430
    %v1432 = vpop.f32.mrf.mxu0
    %1433 = vmatprep.mubr.f32.mxu0 0.0
    %1434 = vmatmul.mubr.f32.gmra.mxu0 %v1336
    %v1435 = vpop.f32.mrf.mxu0
    %v1436 = vadd.f32 0.0, %v1435
    %v1437 = vpop.f32.mrf.mxu0
    %1438 = vmatprep.mubr.f32.mxu0 0.0
    %1439 = vmatmul.mubr.f32.gmra.mxu0 %v1339
    %v1440 = vpop.f32.mrf.mxu0
    %v1441 = vadd.f32 0.0, %v1440
    %v1442 = vpop.f32.mrf.mxu0
    %1443 = vmatprep.mubr.f32.mxu0 0.0
    %1444 = vmatmul.mubr.f32.gmra.mxu0 %v1342
    %v1445 = vpop.f32.mrf.mxu0
    %v1446 = vadd.f32 0.0, %v1445
    %v1447 = vpop.f32.mrf.mxu0
    %1448 = vdwg.mxu0
    %v1450 = vcombine.high %v1315, %v1315
    %v1452 = vunpack.c.l.s4 1966171168
    %v1453 = vunpack.c.0.s8 %v1452
    %v1454 = vlaneseq
    %v1455 = vshrl.u32 %v1454, 7
    %v1456 = vsub.s32 %v1453, %v1455
    %v1457 = vrot.slane %v1315, %v1456
    %v1459 = vunpack.c.l.s4 1966171168
    %v1460 = vunpack.c.0.s8 %v1459
    %v1461 = vlaneseq
    %v1462 = vshrl.u32 %v1461, 7
    %v1463 = vsub.s32 %v1460, %v1462
    %v1464 = vrot.slane %v1450, %v1463
    %v1465 = vcombine.high %v1457, %v1457
    %v1466 = vcombine.high %v1464, %v1464
    %v1468 = vunpack.c.l.s4 1966171168
    %v1469 = vunpack.c.0.s8 %v1468
    %v1470 = vlaneseq
    %v1471 = vshrl.u32 %v1470, 7
    %v1472 = vsub.s32 %v1469, %v1471
    %v1473 = vrot.slane %v1457, %v1472
    %v1475 = vunpack.c.l.s4 1966171168
    %v1476 = vunpack.c.0.s8 %v1475
    %v1477 = vlaneseq
    %v1478 = vshrl.u32 %v1477, 7
    %v1479 = vsub.s32 %v1476, %v1478
    %v1480 = vrot.slane %v1464, %v1479
    %v1482 = vunpack.c.l.s4 1966171168
    %v1483 = vunpack.c.0.s8 %v1482
    %v1484 = vlaneseq
    %v1485 = vshrl.u32 %v1484, 7
    %v1486 = vsub.s32 %v1483, %v1485
    %v1487 = vrot.slane %v1465, %v1486
    %v1489 = vunpack.c.l.s4 1966171168
    %v1490 = vunpack.c.0.s8 %v1489
    %v1491 = vlaneseq
    %v1492 = vshrl.u32 %v1491, 7
    %v1493 = vsub.s32 %v1490, %v1492
    %v1494 = vrot.slane %v1466, %v1493
    %v1495 = vcombine.high %v1473, %v1473
    %v1496 = vcombine.high %v1480, %v1480
    %v1497 = vcombine.high %v1487, %v1487
    %v1498 = vcombine.high %v1494, %v1494
    %v1499 = vlaneseq
    %v1500 = vshrl.u32 %v1499, 7
    %v1501 = vsub.s32 0, %v1500
    %v1502 = vrot.slane %v1473, %v1501
    %v1503 = vlaneseq
    %v1504 = vshrl.u32 %v1503, 7
    %v1505 = vsub.s32 0, %v1504
    %v1506 = vrot.slane %v1487, %v1505
    %v1507 = vlaneseq
    %v1508 = vshrl.u32 %v1507, 7
    %v1509 = vsub.s32 0, %v1508
    %v1510 = vrot.slane %v1495, %v1509
    %v1511 = vlaneseq
    %v1512 = vshrl.u32 %v1511, 7
    %v1513 = vsub.s32 0, %v1512
    %v1514 = vrot.slane %v1497, %v1513
    %v1515 = vlaneseq
    %v1516 = vshrl.u32 %v1515, 7
    %v1517 = vsub.s32 0, %v1516
    %v1518 = vrot.slane %v1480, %v1517
    %v1519 = vlaneseq
    %v1520 = vshrl.u32 %v1519, 7
    %v1521 = vsub.s32 0, %v1520
    %v1522 = vrot.slane %v1494, %v1521
    %v1523 = vlaneseq
    %v1524 = vshrl.u32 %v1523, 7
    %v1525 = vsub.s32 0, %v1524
    %v1526 = vrot.slane %v1496, %v1525
    %v1527 = vlaneseq
    %v1528 = vshrl.u32 %v1527, 7
    %v1529 = vsub.s32 0, %v1528
    %v1530 = vrot.slane %v1498, %v1529
    %v1539 = vadd.f32 %v1411, %v1502
    %v1540 = vadd.f32 %v1416, %v1506
    %v1541 = vadd.f32 %v1421, %v1510
    %v1542 = vadd.f32 %v1426, %v1514
    %v1543 = vadd.f32 %v1431, %v1518
    %v1544 = vadd.f32 %v1436, %v1522
    %v1545 = vadd.f32 %v1441, %v1526
    %v1546 = vadd.f32 %v1446, %v1530
    %v1547 = vxor.u32 %v1539, 2147483648
    %v1548 = vxor.u32 %v1540, 2147483648
    %v1549 = vxor.u32 %v1541, 2147483648
    %v1550 = vxor.u32 %v1542, 2147483648
    %v1551 = vxor.u32 %v1543, 2147483648
    %v1552 = vxor.u32 %v1544, 2147483648
    %v1553 = vxor.u32 %v1545, 2147483648
    %v1554 = vxor.u32 %v1546, 2147483648
    %v1555 = vmul.f32 %v1547, 1.442695
    %v1556 = vpow.pop %v1555
    %v1557 = vmul.f32 %v1548, 1.442695
    %v1558 = vpow.pop %v1557
    %v1559 = vmul.f32 %v1549, 1.442695
    %v1560 = vpow.pop %v1559
    %v1561 = vmul.f32 %v1550, 1.442695
    %v1562 = vpow.pop %v1561
    %v1563 = vmul.f32 %v1551, 1.442695
    %v1564 = vpow.pop %v1563
    %v1565 = vmul.f32 %v1552, 1.442695
    %v1566 = vpow.pop %v1565
    %v1567 = vmul.f32 %v1553, 1.442695
    %v1568 = vpow.pop %v1567
    %v1569 = vmul.f32 %v1554, 1.442695
    %v1570 = vpow.pop %v1569
    %v1571 = vadd.f32 %v1556, 1.0
    %v1572 = vadd.f32 %v1558, 1.0
    %v1573 = vadd.f32 %v1560, 1.0
    %v1574 = vadd.f32 %v1562, 1.0
    %v1575 = vadd.f32 %v1564, 1.0
    %v1576 = vadd.f32 %v1566, 1.0
    %v1577 = vadd.f32 %v1568, 1.0
    %v1578 = vadd.f32 %v1570, 1.0
    %v1579 = vrcp.pop %v1571
    %v1580 = vmul.f32 1.0, %v1579
    %v1581 = vrcp.pop %v1572
    %v1582 = vmul.f32 1.0, %v1581
    %v1583 = vrcp.pop %v1573
    %v1584 = vmul.f32 1.0, %v1583
    %v1585 = vrcp.pop %v1574
    %v1586 = vmul.f32 1.0, %v1585
    %v1587 = vrcp.pop %v1575
    %v1588 = vmul.f32 1.0, %v1587
    %v1589 = vrcp.pop %v1576
    %v1590 = vmul.f32 1.0, %v1589
    %v1591 = vrcp.pop %v1577
    %v1592 = vmul.f32 1.0, %v1591
    %v1593 = vrcp.pop %v1578
    %v1594 = vmul.f32 1.0, %v1593
    %v1595 = vmul.f32 %v225, %v1580
    %v1596 = vmul.f32 %v226, %v1582
    %v1597 = vmul.f32 %v227, %v1584
    %v1598 = vmul.f32 %v228, %v1586
    %v1599 = vmul.f32 %v229, %v1588
    %v1600 = vmul.f32 %v230, %v1590
    %v1601 = vmul.f32 %v231, %v1592
    %v1602 = vmul.f32 %v232, %v1594
    %v1604 = vcombine.high %v1156, %v1156
    %v1606 = vunpack.c.l.s4 1966171168
    %v1607 = vunpack.c.0.s8 %v1606
    %v1608 = vlaneseq
    %v1609 = vshrl.u32 %v1608, 7
    %v1610 = vsub.s32 %v1607, %v1609
    %v1611 = vrot.slane %v1156, %v1610
    %v1613 = vunpack.c.l.s4 1966171168
    %v1614 = vunpack.c.0.s8 %v1613
    %v1615 = vlaneseq
    %v1616 = vshrl.u32 %v1615, 7
    %v1617 = vsub.s32 %v1614, %v1616
    %v1618 = vrot.slane %v1604, %v1617
    %v1619 = vcombine.high %v1611, %v1611
    %v1620 = vcombine.high %v1618, %v1618
    %v1622 = vunpack.c.l.s4 1966171168
    %v1623 = vunpack.c.0.s8 %v1622
    %v1624 = vlaneseq
    %v1625 = vshrl.u32 %v1624, 7
    %v1626 = vsub.s32 %v1623, %v1625
    %v1627 = vrot.slane %v1611, %v1626
    %v1629 = vunpack.c.l.s4 1966171168
    %v1630 = vunpack.c.0.s8 %v1629
    %v1631 = vlaneseq
    %v1632 = vshrl.u32 %v1631, 7
    %v1633 = vsub.s32 %v1630, %v1632
    %v1634 = vrot.slane %v1618, %v1633
    %v1636 = vunpack.c.l.s4 1966171168
    %v1637 = vunpack.c.0.s8 %v1636
    %v1638 = vlaneseq
    %v1639 = vshrl.u32 %v1638, 7
    %v1640 = vsub.s32 %v1637, %v1639
    %v1641 = vrot.slane %v1619, %v1640
    %v1643 = vunpack.c.l.s4 1966171168
    %v1644 = vunpack.c.0.s8 %v1643
    %v1645 = vlaneseq
    %v1646 = vshrl.u32 %v1645, 7
    %v1647 = vsub.s32 %v1644, %v1646
    %v1648 = vrot.slane %v1620, %v1647
    %v1649 = vcombine.high %v1627, %v1627
    %v1650 = vcombine.high %v1634, %v1634
    %v1651 = vcombine.high %v1641, %v1641
    %v1652 = vcombine.high %v1648, %v1648
    %v1653 = vlaneseq
    %v1654 = vshrl.u32 %v1653, 7
    %v1655 = vsub.s32 0, %v1654
    %v1656 = vrot.slane %v1627, %v1655
    %v1657 = vlaneseq
    %v1658 = vshrl.u32 %v1657, 7
    %v1659 = vsub.s32 0, %v1658
    %v1660 = vrot.slane %v1641, %v1659
    %v1661 = vlaneseq
    %v1662 = vshrl.u32 %v1661, 7
    %v1663 = vsub.s32 0, %v1662
    %v1664 = vrot.slane %v1649, %v1663
    %v1665 = vlaneseq
    %v1666 = vshrl.u32 %v1665, 7
    %v1667 = vsub.s32 0, %v1666
    %v1668 = vrot.slane %v1651, %v1667
    %v1669 = vlaneseq
    %v1670 = vshrl.u32 %v1669, 7
    %v1671 = vsub.s32 0, %v1670
    %v1672 = vrot.slane %v1634, %v1671
    %v1673 = vlaneseq
    %v1674 = vshrl.u32 %v1673, 7
    %v1675 = vsub.s32 0, %v1674
    %v1676 = vrot.slane %v1648, %v1675
    %v1677 = vlaneseq
    %v1678 = vshrl.u32 %v1677, 7
    %v1679 = vsub.s32 0, %v1678
    %v1680 = vrot.slane %v1650, %v1679
    %v1681 = vlaneseq
    %v1682 = vshrl.u32 %v1681, 7
    %v1683 = vsub.s32 0, %v1682
    %v1684 = vrot.slane %v1652, %v1683
    %v1693 = vmul.f32 %v239, %v1656
    %v1694 = vmul.f32 %v246, %v1660
    %v1695 = vmul.f32 %v253, %v1664
    %v1696 = vmul.f32 %v260, %v1668
    %v1697 = vmul.f32 %v267, %v1672
    %v1698 = vmul.f32 %v274, %v1676
    %v1699 = vmul.f32 %v281, %v1680
    %v1700 = vmul.f32 %v288, %v1684
    %v1701 = vadd.f32 %v1595, %v1693
    %v1702 = vadd.f32 %v1596, %v1694
    %v1703 = vadd.f32 %v1597, %v1695
    %v1704 = vadd.f32 %v1598, %v1696
    %v1705 = vadd.f32 %v1599, %v1697
    %v1706 = vadd.f32 %v1600, %v1698
    %v1707 = vadd.f32 %v1601, %v1699
    %v1708 = vadd.f32 %v1602, %v1700
    %1709 = vst.msk [vmem:[#allocation22] sm:$0xff] %vm297, %v1701
    %1710 = vst.msk [vmem:[#allocation22 + $0x8] sm:$0xff] %vm297, %v1702
    %1711 = vst.msk [vmem:[#allocation22 + $0x10] sm:$0xff] %vm297, %v1703
    %1712 = vst.msk [vmem:[#allocation22 + $0x18] sm:$0xff] %vm297, %v1704
    %1713 = vst.msk [vmem:[#allocation22 + $0x20] sm:$0xff] %vm297, %v1705
    %1714 = vst.msk [vmem:[#allocation22 + $0x28] sm:$0xff] %vm297, %v1706
    %1715 = vst.msk [vmem:[#allocation22 + $0x30] sm:$0xff] %vm297, %v1707
    %1716 = vst.msk [vmem:[#allocation22 + $0x38] sm:$0xff] %vm297, %v1708
    // Predicated region
    $region130: #{tpu_custom_call.1} parent=1 // pred_check
      _
    $region131: #{tpu_custom_call.1} parent=1 // pred_check_branch
      %1718 = sbr.rel (0) target = $region133
    $region132: #{tpu_custom_call.1} parent=1 // pred_region
      _
    $region133: #{tpu_custom_call.1} parent=1 // pred_fallthru
      _
    // Predicated region
    $region134: #{tpu_custom_call.1} parent=1 // pred_check
      _
    $region135: #{tpu_custom_call.1} parent=1 // pred_check_branch
      %1720 = sbr.rel (0) target = $region137
    $region136: #{tpu_custom_call.1} parent=1 // pred_region
      %s1722 = ssub.s32 1024, 1024
      %1723 = vsyncadd [#allocation4], %s1722
      %s1724 = sshll.u32 [#allocation22], 4
      %s1725 = int_to_ptr.vmem [resolvable:$true] %s1724
      %1730 = dma.vmem_to_hbm [thread:$0]  %s1725, 1024, %s21, [#allocation4], 128, 128, 8
    $region137: #{tpu_custom_call.1} parent=1 // pred_fallthru
      _
    // Predicated region
    $region138: #{tpu_custom_call.1} parent=1 // pred_check
      _
    $region139: #{tpu_custom_call.1} parent=1 // pred_check_branch
      %1732 = sbr.rel (0) target = $region141
    $region140: #{tpu_custom_call.1} parent=1 // pred_region
      _
    $region141: #{tpu_custom_call.1} parent=1 // pred_fallthru
      _
    // Predicated region
    $region142: #{tpu_custom_call.1} parent=1 // pred_check
      _
    $region143: #{tpu_custom_call.1} parent=1 // pred_check_branch
      %1734 = sbr.rel (0) target = $region145
    $region144: #{tpu_custom_call.1} parent=1 // pred_region
      %1735 = dma.done [#allocation4], 1024
    $region145: #{tpu_custom_call.1} parent=1 // pred_fallthru
      _
    %1736 = vsyncpa [#allocation3], 1
    %1737 = vsyncpa [#allocation6], 1
    %1738 = vsyncpa [#allocation9], 1
    %1739 = vsyncpa [#allocation12], 1
    %1740 = vsyncpa [#allocation15], 1
    %1741 = vsyncpa [#allocation18], 1
    %1742 = vsyncpa [#allocation21], 1
    %1743 = vsyncpa [#allocation4], 1

</llo_original>
